<compile_context>
chip_gen: v5e
topology: v5e:2x2
jax: 0.10.0
libtpu: 0.0.40
codegen_flags: <defaults>
</compile_context>

<pallas_src>
import jax
import jax.numpy as jnp
from jax.experimental import pallas as pl
from jax.experimental.pallas import tpu as pltpu


def _round_up8(n):
    return (n + 7) // 8 * 8


def _pack_offsets(D_in, H):
    """Row offsets of each section inside the packed (rows, 4H) weight array.
    Every section starts on an 8-row (sublane-tile) boundary."""
    off = {}
    r = 0
    for name, rows in (("wih1", D_in), ("whh1", H), ("b1", 1),
                       ("whh2", H), ("b2", 1), ("linw", H), ("linb", 1)):
        off[name] = r
        r += _round_up8(rows)
    off["rows"] = _round_up8(r)
    return off


def _permute_gates(w, H):
    """Reorder gate columns [i, f, g, o] (PyTorch order) -> kernel order [f, i, o, g]."""
    i, f, g, o = jnp.split(w, 4, axis=1)
    return jnp.concatenate([f, i, o, g], axis=1)


def pack_params(params, D_in, H, D_out):
    """Pack all weights/biases into one (rows, 4H) f32 array (single DMA)."""
    off = _pack_offsets(D_in, H)
    width = 4 * H
    buf = jnp.zeros((off["rows"], width), jnp.float32)

    def put(b, name, arr):
        r = off[name]
        return b.at[r:r + arr.shape[0], :arr.shape[1]].set(arr.astype(jnp.float32))

    buf = put(buf, "wih1", _permute_gates(params["wih1"], H))
    buf = put(buf, "whh1", _permute_gates(params["whh1"], H))
    buf = put(buf, "b1",   _permute_gates(params["b1"], H))
    buf = put(buf, "whh2", _permute_gates(params["whh2"], H))
    buf = put(buf, "b2",   _permute_gates(params["b2"], H))
    buf = put(buf, "linw", params["linw"])     # (H, D_out), zero-padded to 4H lanes
    buf = put(buf, "linb", params["linb"])     # (1, D_out)
    return buf, off


def _make_kernel(B, T_in, T_out, D_in, D_out, H, off):
    """Build the Pallas kernel with all dims / section offsets baked in as Python ints."""

    def kernel(x_ref, w_ref, out_ref, hs_ref):
        # x_ref:  (T_in*B, D_in) time-major input
        # w_ref:  (rows, 4H) packed weights (gate order [f, i, o, g])
        # out_ref:(T_out*B, D_out) time-major output
        # hs_ref: (T_out*B, H) VMEM scratch for decoder hidden states
        wih1 = w_ref[off["wih1"]:off["wih1"] + D_in, :]   # (D_in, 4H)
        whh1 = w_ref[off["whh1"]:off["whh1"] + H, :]      # (H, 4H)
        b1   = w_ref[off["b1"]:off["b1"] + 1, :]          # (1, 4H) = b_ih1 + b_hh1
        whh2 = w_ref[off["whh2"]:off["whh2"] + H, :]      # (H, 4H)
        b2   = w_ref[off["b2"]:off["b2"] + 1, :]          # (1, 4H) = b_ih2 + b_hh2
        linw = w_ref[off["linw"]:off["linw"] + H, :]      # (H, 4H) [:, :D_out] valid
        linb = w_ref[off["linb"]:off["linb"] + 1, :]      # (1, 4H) [:, :D_out] valid

        # ---- encoder input projection hoisted out of the recurrence ----
        # One (T_in*B, D_in) @ (D_in, 4H) matmul; per-step we take a contiguous
        # sublane slab of B rows (static slice, off the recurrent chain).
        inp_all = jnp.dot(x_ref[...].astype(jnp.float32), wih1,
                          preferred_element_type=jnp.float32) + b1     # (T_in*B, 4H)

        def cell(inp, h, c, whh):
            # inp: (*, 4H) pre-activation term (already contains x@W_ih + biases),
            # gate column order [f, i, o, g].
            gates = inp + jnp.dot(h, whh, preferred_element_type=jnp.float32)  # (B,4H)
            sig = jax.nn.sigmoid(gates)                 # [f | i | o | .]
            th = jnp.tanh(gates)                        # [. | . | . | g]
            # Single lane rotation by 2 gate slots (direction-agnostic since 2H of 4H):
            # sig_r = [o | . | f | i]  ->  `o` is an offset-0 slice, `i` aligns with g.
            sig_r = pltpu.roll(sig, 2 * H, axis=1)
            f = sig[:, :H]                              # offset-0 slice (free)
            o = sig_r[:, :H]                            # offset-0 slice (free)
            ig = (sig_r * th)[:, 3 * H:4 * H]           # i * g (one lane extraction)
            c_new = f * c + ig
            h_new = o * jnp.tanh(c_new)
            return h_new, c_new

        h = jnp.zeros((B, H), jnp.float32)
        c = jnp.zeros((B, H), jnp.float32)

        # ---- encoder (rnn1): only final (h, c) is kept; fully unrolled ----
        for t in range(T_in):
            h, c = cell(inp_all[t * B:(t + 1) * B, :], h, c, whh1)

        # ---- decoder (rnn2) on zero inputs, initialized with encoder state ----
        # Hidden states go to VMEM scratch (store is off the dependency chain).
        for t in range(T_out):
            h, c = cell(b2, h, c, whh2)
            hs_ref[t * B:(t + 1) * B, :] = h

        # ---- per-step Linear as one (T_out*B, H) @ (H, 4H) matmul + single store ----
        y = jnp.dot(hs_ref[...], linw, preferred_element_type=jnp.float32) + linb
        out_ref[...] = y[:, :D_out].astype(out_ref.dtype)

    return kernel


def seq2seq1_forward(x, params, T_out, D_out):
    """Seq2Seq1 forward.  NOTE: the decoder is fed all-zero inputs (as in the PyTorch
    module); W_ih2 is folded into b2 and no decoder inputs are consumed."""
    B, T_in, D_in = x.shape
    H = params["whh1"].shape[0]
    assert H % 8 == 0, "H must be a multiple of 8 for the packed-weight row layout"
    assert D_out <= 4 * H, "D_out must fit in the packed lane width"

    packed_w, off = pack_params(params, D_in, H, D_out)
    # Time-major layout: per-step input-projection slab is a contiguous sublane slice.
    x_tm = jnp.transpose(x, (1, 0, 2)).reshape(T_in * B, D_in).astype(jnp.float32)

    kernel = _make_kernel(B, T_in, T_out, D_in, D_out, H, off)

    y = pl.pallas_call(
        kernel,
        out_shape=jax.ShapeDtypeStruct((T_out * B, D_out), x.dtype),
        in_specs=[pl.BlockSpec(memory_space=pltpu.MemorySpace.VMEM),
                  pl.BlockSpec(memory_space=pltpu.MemorySpace.VMEM)],
        out_specs=pl.BlockSpec(memory_space=pltpu.MemorySpace.VMEM),
        scratch_shapes=[pltpu.VMEM((T_out * B, H), jnp.float32)],
    )(x_tm, packed_w)

    # Layout plumbing only: time-major (T_out*B, D_out) -> (B, T_out, D_out).
    return y.reshape(T_out, B, D_out).transpose(1, 0, 2)


def init_params(key, D_in, H, D_out):
    """Deterministic init mimicking PyTorch LSTM's uniform(-1/sqrt(H), 1/sqrt(H)).
    Weights stored pre-transposed as (in_dim, 4H) / (H, 4H), gate order [i, f, g, o]."""
    ks = jax.random.split(key, 9)
    s = 1.0 / float(jnp.sqrt(H))
    u = lambda k, shape: jax.random.uniform(k, shape, jnp.float32, -s, s)
    return {
        "wih1": u(ks[0], (D_in, 4 * H)),
        "whh1": u(ks[1], (H, 4 * H)),
        "b1":   u(ks[2], (1, 4 * H)) + u(ks[3], (1, 4 * H)),   # b_ih1 + b_hh1
        "whh2": u(ks[4], (H, 4 * H)),
        "b2":   u(ks[5], (1, 4 * H)) + u(ks[6], (1, 4 * H)),   # b_ih2 + b_hh2
        "linw": u(ks[7], (H, D_out)),
        "linb": u(ks[8], (1, D_out)),
    }


def reference_forward(x, p, T_out):
    """Pure-JAX reference of the same math (standard [i,f,g,o] gate order)."""
    H = p["whh1"].shape[0]
    B = x.shape[0]

    def cell(inp, h, c, whh):
        g = inp + h @ whh
        i = jax.nn.sigmoid(g[:, :H])
        f = jax.nn.sigmoid(g[:, H:2 * H])
        gg = jnp.tanh(g[:, 2 * H:3 * H])
        o = jax.nn.sigmoid(g[:, 3 * H:])
        c = f * c + i * gg
        return o * jnp.tanh(c), c

    h = jnp.zeros((B, H), jnp.float32)
    c = jnp.zeros((B, H), jnp.float32)
    for t in range(x.shape[1]):
        h, c = cell(x[:, t, :] @ p["wih1"] + p["b1"], h, c, p["whh1"])
    ys = []
    for _ in range(T_out):
        h, c = cell(p["b2"], h, c, p["whh2"])
        ys.append(h @ p["linw"] + p["linb"])
    return jnp.stack(ys, axis=1)


if __name__ == "__main__":
    # module config: input_shape=(T_in, D_in), output_shape=(T_out, D_out), hidden=32
    B, T_in, D_in = 2, 8, 4
    T_out, D_out = 8, 6
    H = 32

    key = jax.random.PRNGKey(0)
    kx, kp = jax.random.split(key)
    x = jax.random.normal(kx, (B, T_in, D_in), jnp.float32)
    params = init_params(kp, D_in, H, D_out)

    fwd = jax.jit(seq2seq1_forward, static_argnums=(2, 3))
    out = fwd(x, params, T_out, D_out)
    out = jax.block_until_ready(out)

    ref = reference_forward(x, params, T_out)
    assert out.shape == (B, T_out, D_out)
    max_err = float(jnp.max(jnp.abs(out - ref)))
    # all-fp32 path; small slack only for Mosaic-vs-XLA transcendental differences
    assert max_err < 1e-4, f"mismatch vs reference: {max_err}"

    print("KERNEL_OK")
</pallas_src>

<mosaic_0001>
module attributes {stable_mosaic.version = 11 : i64} {
  func.func @kernel(%arg0: memref<16x4xf32, #tpu.memory_space<vmem>>, %arg1: memref<128x128xf32, #tpu.memory_space<vmem>>, %arg2: memref<16x6xf32, #tpu.memory_space<vmem>>, %arg3: memref<16x32xf32, #tpu.memory_space<vmem>>) attributes {dimension_semantics = [], scalar_prefetch = 0 : i64, scratch_operands = 1 : i64, tpu.core_type = #tpu.core_type<tc>} {
    %c0 = arith.constant 0 : index
    %c0_0 = arith.constant 0 : index
    %0 = vector.load %arg1[%c0, %c0_0] : memref<128x128xf32, #tpu.memory_space<vmem>>, vector<4x128xf32>
    %c8 = arith.constant 8 : index
    %c0_1 = arith.constant 0 : index
    %1 = vector.load %arg1[%c8, %c0_1] : memref<128x128xf32, #tpu.memory_space<vmem>>, vector<32x128xf32>
    %c40 = arith.constant 40 : index
    %c0_2 = arith.constant 0 : index
    %2 = vector.load %arg1[%c40, %c0_2] : memref<128x128xf32, #tpu.memory_space<vmem>>, vector<1x128xf32>
    %c48 = arith.constant 48 : index
    %c0_3 = arith.constant 0 : index
    %3 = vector.load %arg1[%c48, %c0_3] : memref<128x128xf32, #tpu.memory_space<vmem>>, vector<32x128xf32>
    %c80 = arith.constant 80 : index
    %c0_4 = arith.constant 0 : index
    %4 = vector.load %arg1[%c80, %c0_4] : memref<128x128xf32, #tpu.memory_space<vmem>>, vector<1x128xf32>
    %c88 = arith.constant 88 : index
    %c0_5 = arith.constant 0 : index
    %5 = vector.load %arg1[%c88, %c0_5] : memref<128x128xf32, #tpu.memory_space<vmem>>, vector<32x128xf32>
    %c120 = arith.constant 120 : index
    %c0_6 = arith.constant 0 : index
    %6 = vector.load %arg1[%c120, %c0_6] : memref<128x128xf32, #tpu.memory_space<vmem>>, vector<1x128xf32>
    %c0_7 = arith.constant 0 : index
    %c0_8 = arith.constant 0 : index
    %7 = vector.load %arg0[%c0_7, %c0_8] : memref<16x4xf32, #tpu.memory_space<vmem>>, vector<16x4xf32>
    %cst = arith.constant dense<0.000000e+00> : vector<16x128xf32>
    %8 = tpu.matmul %7, %0, %cst {dimension_numbers = #tpu.dot_dimension_numbers<[1], [0], [0], [1], [0, 0, 1, 1], [], []>} : vector<16x4xf32>, vector<4x128xf32>, vector<16x128xf32> -> vector<16x128xf32>
    %9 = vector.broadcast %2 : vector<1x128xf32> to vector<16x128xf32>
    %10 = arith.addf %8, %9 : vector<16x128xf32>
    %cst_9 = arith.constant 0.000000e+00 : f32
    %11 = vector.broadcast %cst_9 : f32 to vector<2x32xf32>
    %cst_10 = arith.constant 0.000000e+00 : f32
    %12 = vector.broadcast %cst_10 : f32 to vector<2x32xf32>
    %13 = vector.extract_strided_slice %10 {offsets = [0, 0], sizes = [2, 128], strides = [1, 1]} : vector<16x128xf32> to vector<2x128xf32>
    %cst_11 = arith.constant dense<0.000000e+00> : vector<2x128xf32>
    %14 = tpu.matmul %11, %1, %cst_11 {dimension_numbers = #tpu.dot_dimension_numbers<[1], [0], [0], [1], [0, 0, 1, 1], [], []>} : vector<2x32xf32>, vector<32x128xf32>, vector<2x128xf32> -> vector<2x128xf32>
    %15 = arith.addf %13, %14 : vector<2x128xf32>
    %16 = arith.negf %15 : vector<2x128xf32>
    %17 = math.exp %16 : vector<2x128xf32>
    %cst_12 = arith.constant 1.000000e+00 : f32
    %18 = vector.broadcast %cst_12 : f32 to vector<2x128xf32>
    %19 = arith.addf %18, %17 : vector<2x128xf32>
    %20 = arith.divf %18, %19 : vector<2x128xf32>
    %21 = math.tanh %15 : vector<2x128xf32>
    %c64_i32 = arith.constant 64 : i32
    %22 = tpu.dynamic_rotate %20 by %c64_i32 dim 1 : vector<2x128xf32>, i32 -> vector<2x128xf32>
    %23 = vector.extract_strided_slice %20 {offsets = [0, 0], sizes = [2, 32], strides = [1, 1]} : vector<2x128xf32> to vector<2x32xf32>
    %24 = vector.extract_strided_slice %22 {offsets = [0, 0], sizes = [2, 32], strides = [1, 1]} : vector<2x128xf32> to vector<2x32xf32>
    %25 = arith.mulf %22, %21 : vector<2x128xf32>
    %26 = vector.extract_strided_slice %25 {offsets = [0, 96], sizes = [2, 32], strides = [1, 1]} : vector<2x128xf32> to vector<2x32xf32>
    %27 = arith.mulf %23, %12 : vector<2x32xf32>
    %28 = arith.addf %27, %26 : vector<2x32xf32>
    %29 = math.tanh %28 : vector<2x32xf32>
    %30 = arith.mulf %24, %29 : vector<2x32xf32>
    %31 = vector.extract_strided_slice %10 {offsets = [2, 0], sizes = [2, 128], strides = [1, 1]} : vector<16x128xf32> to vector<2x128xf32>
    %cst_13 = arith.constant dense<0.000000e+00> : vector<2x128xf32>
    %32 = tpu.matmul %30, %1, %cst_13 {dimension_numbers = #tpu.dot_dimension_numbers<[1], [0], [0], [1], [0, 0, 1, 1], [], []>} : vector<2x32xf32>, vector<32x128xf32>, vector<2x128xf32> -> vector<2x128xf32>
    %33 = arith.addf %31, %32 : vector<2x128xf32>
    %34 = arith.negf %33 : vector<2x128xf32>
    %35 = math.exp %34 : vector<2x128xf32>
    %cst_14 = arith.constant 1.000000e+00 : f32
    %36 = vector.broadcast %cst_14 : f32 to vector<2x128xf32>
    %37 = arith.addf %36, %35 : vector<2x128xf32>
    %38 = arith.divf %36, %37 : vector<2x128xf32>
    %39 = math.tanh %33 : vector<2x128xf32>
    %c64_i32_15 = arith.constant 64 : i32
    %40 = tpu.dynamic_rotate %38 by %c64_i32_15 dim 1 : vector<2x128xf32>, i32 -> vector<2x128xf32>
    %41 = vector.extract_strided_slice %38 {offsets = [0, 0], sizes = [2, 32], strides = [1, 1]} : vector<2x128xf32> to vector<2x32xf32>
    %42 = vector.extract_strided_slice %40 {offsets = [0, 0], sizes = [2, 32], strides = [1, 1]} : vector<2x128xf32> to vector<2x32xf32>
    %43 = arith.mulf %40, %39 : vector<2x128xf32>
    %44 = vector.extract_strided_slice %43 {offsets = [0, 96], sizes = [2, 32], strides = [1, 1]} : vector<2x128xf32> to vector<2x32xf32>
    %45 = arith.mulf %41, %28 : vector<2x32xf32>
    %46 = arith.addf %45, %44 : vector<2x32xf32>
    %47 = math.tanh %46 : vector<2x32xf32>
    %48 = arith.mulf %42, %47 : vector<2x32xf32>
    %49 = vector.extract_strided_slice %10 {offsets = [4, 0], sizes = [2, 128], strides = [1, 1]} : vector<16x128xf32> to vector<2x128xf32>
    %cst_16 = arith.constant dense<0.000000e+00> : vector<2x128xf32>
    %50 = tpu.matmul %48, %1, %cst_16 {dimension_numbers = #tpu.dot_dimension_numbers<[1], [0], [0], [1], [0, 0, 1, 1], [], []>} : vector<2x32xf32>, vector<32x128xf32>, vector<2x128xf32> -> vector<2x128xf32>
    %51 = arith.addf %49, %50 : vector<2x128xf32>
    %52 = arith.negf %51 : vector<2x128xf32>
    %53 = math.exp %52 : vector<2x128xf32>
    %cst_17 = arith.constant 1.000000e+00 : f32
    %54 = vector.broadcast %cst_17 : f32 to vector<2x128xf32>
    %55 = arith.addf %54, %53 : vector<2x128xf32>
    %56 = arith.divf %54, %55 : vector<2x128xf32>
    %57 = math.tanh %51 : vector<2x128xf32>
    %c64_i32_18 = arith.constant 64 : i32
    %58 = tpu.dynamic_rotate %56 by %c64_i32_18 dim 1 : vector<2x128xf32>, i32 -> vector<2x128xf32>
    %59 = vector.extract_strided_slice %56 {offsets = [0, 0], sizes = [2, 32], strides = [1, 1]} : vector<2x128xf32> to vector<2x32xf32>
    %60 = vector.extract_strided_slice %58 {offsets = [0, 0], sizes = [2, 32], strides = [1, 1]} : vector<2x128xf32> to vector<2x32xf32>
    %61 = arith.mulf %58, %57 : vector<2x128xf32>
    %62 = vector.extract_strided_slice %61 {offsets = [0, 96], sizes = [2, 32], strides = [1, 1]} : vector<2x128xf32> to vector<2x32xf32>
    %63 = arith.mulf %59, %46 : vector<2x32xf32>
    %64 = arith.addf %63, %62 : vector<2x32xf32>
    %65 = math.tanh %64 : vector<2x32xf32>
    %66 = arith.mulf %60, %65 : vector<2x32xf32>
    %67 = vector.extract_strided_slice %10 {offsets = [6, 0], sizes = [2, 128], strides = [1, 1]} : vector<16x128xf32> to vector<2x128xf32>
    %cst_19 = arith.constant dense<0.000000e+00> : vector<2x128xf32>
    %68 = tpu.matmul %66, %1, %cst_19 {dimension_numbers = #tpu.dot_dimension_numbers<[1], [0], [0], [1], [0, 0, 1, 1], [], []>} : vector<2x32xf32>, vector<32x128xf32>, vector<2x128xf32> -> vector<2x128xf32>
    %69 = arith.addf %67, %68 : vector<2x128xf32>
    %70 = arith.negf %69 : vector<2x128xf32>
    %71 = math.exp %70 : vector<2x128xf32>
    %cst_20 = arith.constant 1.000000e+00 : f32
    %72 = vector.broadcast %cst_20 : f32 to vector<2x128xf32>
    %73 = arith.addf %72, %71 : vector<2x128xf32>
    %74 = arith.divf %72, %73 : vector<2x128xf32>
    %75 = math.tanh %69 : vector<2x128xf32>
    %c64_i32_21 = arith.constant 64 : i32
    %76 = tpu.dynamic_rotate %74 by %c64_i32_21 dim 1 : vector<2x128xf32>, i32 -> vector<2x128xf32>
    %77 = vector.extract_strided_slice %74 {offsets = [0, 0], sizes = [2, 32], strides = [1, 1]} : vector<2x128xf32> to vector<2x32xf32>
    %78 = vector.extract_strided_slice %76 {offsets = [0, 0], sizes = [2, 32], strides = [1, 1]} : vector<2x128xf32> to vector<2x32xf32>
    %79 = arith.mulf %76, %75 : vector<2x128xf32>
    %80 = vector.extract_strided_slice %79 {offsets = [0, 96], sizes = [2, 32], strides = [1, 1]} : vector<2x128xf32> to vector<2x32xf32>
    %81 = arith.mulf %77, %64 : vector<2x32xf32>
    %82 = arith.addf %81, %80 : vector<2x32xf32>
    %83 = math.tanh %82 : vector<2x32xf32>
    %84 = arith.mulf %78, %83 : vector<2x32xf32>
    %85 = vector.extract_strided_slice %10 {offsets = [8, 0], sizes = [2, 128], strides = [1, 1]} : vector<16x128xf32> to vector<2x128xf32>
    %cst_22 = arith.constant dense<0.000000e+00> : vector<2x128xf32>
    %86 = tpu.matmul %84, %1, %cst_22 {dimension_numbers = #tpu.dot_dimension_numbers<[1], [0], [0], [1], [0, 0, 1, 1], [], []>} : vector<2x32xf32>, vector<32x128xf32>, vector<2x128xf32> -> vector<2x128xf32>
    %87 = arith.addf %85, %86 : vector<2x128xf32>
    %88 = arith.negf %87 : vector<2x128xf32>
    %89 = math.exp %88 : vector<2x128xf32>
    %cst_23 = arith.constant 1.000000e+00 : f32
    %90 = vector.broadcast %cst_23 : f32 to vector<2x128xf32>
    %91 = arith.addf %90, %89 : vector<2x128xf32>
    %92 = arith.divf %90, %91 : vector<2x128xf32>
    %93 = math.tanh %87 : vector<2x128xf32>
    %c64_i32_24 = arith.constant 64 : i32
    %94 = tpu.dynamic_rotate %92 by %c64_i32_24 dim 1 : vector<2x128xf32>, i32 -> vector<2x128xf32>
    %95 = vector.extract_strided_slice %92 {offsets = [0, 0], sizes = [2, 32], strides = [1, 1]} : vector<2x128xf32> to vector<2x32xf32>
    %96 = vector.extract_strided_slice %94 {offsets = [0, 0], sizes = [2, 32], strides = [1, 1]} : vector<2x128xf32> to vector<2x32xf32>
    %97 = arith.mulf %94, %93 : vector<2x128xf32>
    %98 = vector.extract_strided_slice %97 {offsets = [0, 96], sizes = [2, 32], strides = [1, 1]} : vector<2x128xf32> to vector<2x32xf32>
    %99 = arith.mulf %95, %82 : vector<2x32xf32>
    %100 = arith.addf %99, %98 : vector<2x32xf32>
    %101 = math.tanh %100 : vector<2x32xf32>
    %102 = arith.mulf %96, %101 : vector<2x32xf32>
    %103 = vector.extract_strided_slice %10 {offsets = [10, 0], sizes = [2, 128], strides = [1, 1]} : vector<16x128xf32> to vector<2x128xf32>
    %cst_25 = arith.constant dense<0.000000e+00> : vector<2x128xf32>
    %104 = tpu.matmul %102, %1, %cst_25 {dimension_numbers = #tpu.dot_dimension_numbers<[1], [0], [0], [1], [0, 0, 1, 1], [], []>} : vector<2x32xf32>, vector<32x128xf32>, vector<2x128xf32> -> vector<2x128xf32>
    %105 = arith.addf %103, %104 : vector<2x128xf32>
    %106 = arith.negf %105 : vector<2x128xf32>
    %107 = math.exp %106 : vector<2x128xf32>
    %cst_26 = arith.constant 1.000000e+00 : f32
    %108 = vector.broadcast %cst_26 : f32 to vector<2x128xf32>
    %109 = arith.addf %108, %107 : vector<2x128xf32>
    %110 = arith.divf %108, %109 : vector<2x128xf32>
    %111 = math.tanh %105 : vector<2x128xf32>
    %c64_i32_27 = arith.constant 64 : i32
    %112 = tpu.dynamic_rotate %110 by %c64_i32_27 dim 1 : vector<2x128xf32>, i32 -> vector<2x128xf32>
    %113 = vector.extract_strided_slice %110 {offsets = [0, 0], sizes = [2, 32], strides = [1, 1]} : vector<2x128xf32> to vector<2x32xf32>
    %114 = vector.extract_strided_slice %112 {offsets = [0, 0], sizes = [2, 32], strides = [1, 1]} : vector<2x128xf32> to vector<2x32xf32>
    %115 = arith.mulf %112, %111 : vector<2x128xf32>
    %116 = vector.extract_strided_slice %115 {offsets = [0, 96], sizes = [2, 32], strides = [1, 1]} : vector<2x128xf32> to vector<2x32xf32>
    %117 = arith.mulf %113, %100 : vector<2x32xf32>
    %118 = arith.addf %117, %116 : vector<2x32xf32>
    %119 = math.tanh %118 : vector<2x32xf32>
    %120 = arith.mulf %114, %119 : vector<2x32xf32>
    %121 = vector.extract_strided_slice %10 {offsets = [12, 0], sizes = [2, 128], strides = [1, 1]} : vector<16x128xf32> to vector<2x128xf32>
    %cst_28 = arith.constant dense<0.000000e+00> : vector<2x128xf32>
    %122 = tpu.matmul %120, %1, %cst_28 {dimension_numbers = #tpu.dot_dimension_numbers<[1], [0], [0], [1], [0, 0, 1, 1], [], []>} : vector<2x32xf32>, vector<32x128xf32>, vector<2x128xf32> -> vector<2x128xf32>
    %123 = arith.addf %121, %122 : vector<2x128xf32>
    %124 = arith.negf %123 : vector<2x128xf32>
    %125 = math.exp %124 : vector<2x128xf32>
    %cst_29 = arith.constant 1.000000e+00 : f32
    %126 = vector.broadcast %cst_29 : f32 to vector<2x128xf32>
    %127 = arith.addf %126, %125 : vector<2x128xf32>
    %128 = arith.divf %126, %127 : vector<2x128xf32>
    %129 = math.tanh %123 : vector<2x128xf32>
    %c64_i32_30 = arith.constant 64 : i32
    %130 = tpu.dynamic_rotate %128 by %c64_i32_30 dim 1 : vector<2x128xf32>, i32 -> vector<2x128xf32>
    %131 = vector.extract_strided_slice %128 {offsets = [0, 0], sizes = [2, 32], strides = [1, 1]} : vector<2x128xf32> to vector<2x32xf32>
    %132 = vector.extract_strided_slice %130 {offsets = [0, 0], sizes = [2, 32], strides = [1, 1]} : vector<2x128xf32> to vector<2x32xf32>
    %133 = arith.mulf %130, %129 : vector<2x128xf32>
    %134 = vector.extract_strided_slice %133 {offsets = [0, 96], sizes = [2, 32], strides = [1, 1]} : vector<2x128xf32> to vector<2x32xf32>
    %135 = arith.mulf %131, %118 : vector<2x32xf32>
    %136 = arith.addf %135, %134 : vector<2x32xf32>
    %137 = math.tanh %136 : vector<2x32xf32>
    %138 = arith.mulf %132, %137 : vector<2x32xf32>
    %139 = vector.extract_strided_slice %10 {offsets = [14, 0], sizes = [2, 128], strides = [1, 1]} : vector<16x128xf32> to vector<2x128xf32>
    %cst_31 = arith.constant dense<0.000000e+00> : vector<2x128xf32>
    %140 = tpu.matmul %138, %1, %cst_31 {dimension_numbers = #tpu.dot_dimension_numbers<[1], [0], [0], [1], [0, 0, 1, 1], [], []>} : vector<2x32xf32>, vector<32x128xf32>, vector<2x128xf32> -> vector<2x128xf32>
    %141 = arith.addf %139, %140 : vector<2x128xf32>
    %142 = arith.negf %141 : vector<2x128xf32>
    %143 = math.exp %142 : vector<2x128xf32>
    %cst_32 = arith.constant 1.000000e+00 : f32
    %144 = vector.broadcast %cst_32 : f32 to vector<2x128xf32>
    %145 = arith.addf %144, %143 : vector<2x128xf32>
    %146 = arith.divf %144, %145 : vector<2x128xf32>
    %147 = math.tanh %141 : vector<2x128xf32>
    %c64_i32_33 = arith.constant 64 : i32
    %148 = tpu.dynamic_rotate %146 by %c64_i32_33 dim 1 : vector<2x128xf32>, i32 -> vector<2x128xf32>
    %149 = vector.extract_strided_slice %146 {offsets = [0, 0], sizes = [2, 32], strides = [1, 1]} : vector<2x128xf32> to vector<2x32xf32>
    %150 = vector.extract_strided_slice %148 {offsets = [0, 0], sizes = [2, 32], strides = [1, 1]} : vector<2x128xf32> to vector<2x32xf32>
    %151 = arith.mulf %148, %147 : vector<2x128xf32>
    %152 = vector.extract_strided_slice %151 {offsets = [0, 96], sizes = [2, 32], strides = [1, 1]} : vector<2x128xf32> to vector<2x32xf32>
    %153 = arith.mulf %149, %136 : vector<2x32xf32>
    %154 = arith.addf %153, %152 : vector<2x32xf32>
    %155 = math.tanh %154 : vector<2x32xf32>
    %156 = arith.mulf %150, %155 : vector<2x32xf32>
    %cst_34 = arith.constant dense<0.000000e+00> : vector<2x128xf32>
    %157 = tpu.matmul %156, %3, %cst_34 {dimension_numbers = #tpu.dot_dimension_numbers<[1], [0], [0], [1], [0, 0, 1, 1], [], []>} : vector<2x32xf32>, vector<32x128xf32>, vector<2x128xf32> -> vector<2x128xf32>
    %158 = vector.broadcast %4 : vector<1x128xf32> to vector<2x128xf32>
    %159 = arith.addf %158, %157 : vector<2x128xf32>
    %160 = arith.negf %159 : vector<2x128xf32>
    %161 = math.exp %160 : vector<2x128xf32>
    %cst_35 = arith.constant 1.000000e+00 : f32
    %162 = vector.broadcast %cst_35 : f32 to vector<2x128xf32>
    %163 = arith.addf %162, %161 : vector<2x128xf32>
    %164 = arith.divf %162, %163 : vector<2x128xf32>
    %165 = math.tanh %159 : vector<2x128xf32>
    %c64_i32_36 = arith.constant 64 : i32
    %166 = tpu.dynamic_rotate %164 by %c64_i32_36 dim 1 : vector<2x128xf32>, i32 -> vector<2x128xf32>
    %167 = vector.extract_strided_slice %164 {offsets = [0, 0], sizes = [2, 32], strides = [1, 1]} : vector<2x128xf32> to vector<2x32xf32>
    %168 = vector.extract_strided_slice %166 {offsets = [0, 0], sizes = [2, 32], strides = [1, 1]} : vector<2x128xf32> to vector<2x32xf32>
    %169 = arith.mulf %166, %165 : vector<2x128xf32>
    %170 = vector.extract_strided_slice %169 {offsets = [0, 96], sizes = [2, 32], strides = [1, 1]} : vector<2x128xf32> to vector<2x32xf32>
    %171 = arith.mulf %167, %154 : vector<2x32xf32>
    %172 = arith.addf %171, %170 : vector<2x32xf32>
    %173 = math.tanh %172 : vector<2x32xf32>
    %174 = arith.mulf %168, %173 : vector<2x32xf32>
    %c0_37 = arith.constant 0 : index
    %c0_38 = arith.constant 0 : index
    %175 = vector.load %arg3[%c0_37, %c0_38] : memref<16x32xf32, #tpu.memory_space<vmem>>, vector<2x32xf32>
    tpu.vector_store %arg3[%c0_37, %c0_38], %174 {strides = array<i32>} : memref<16x32xf32, #tpu.memory_space<vmem>>, vector<2x32xf32>,
    %cst_39 = arith.constant dense<0.000000e+00> : vector<2x128xf32>
    %176 = tpu.matmul %174, %3, %cst_39 {dimension_numbers = #tpu.dot_dimension_numbers<[1], [0], [0], [1], [0, 0, 1, 1], [], []>} : vector<2x32xf32>, vector<32x128xf32>, vector<2x128xf32> -> vector<2x128xf32>
    %177 = vector.broadcast %4 : vector<1x128xf32> to vector<2x128xf32>
    %178 = arith.addf %177, %176 : vector<2x128xf32>
    %179 = arith.negf %178 : vector<2x128xf32>
    %180 = math.exp %179 : vector<2x128xf32>
    %cst_40 = arith.constant 1.000000e+00 : f32
    %181 = vector.broadcast %cst_40 : f32 to vector<2x128xf32>
    %182 = arith.addf %181, %180 : vector<2x128xf32>
    %183 = arith.divf %181, %182 : vector<2x128xf32>
    %184 = math.tanh %178 : vector<2x128xf32>
    %c64_i32_41 = arith.constant 64 : i32
    %185 = tpu.dynamic_rotate %183 by %c64_i32_41 dim 1 : vector<2x128xf32>, i32 -> vector<2x128xf32>
    %186 = vector.extract_strided_slice %183 {offsets = [0, 0], sizes = [2, 32], strides = [1, 1]} : vector<2x128xf32> to vector<2x32xf32>
    %187 = vector.extract_strided_slice %185 {offsets = [0, 0], sizes = [2, 32], strides = [1, 1]} : vector<2x128xf32> to vector<2x32xf32>
    %188 = arith.mulf %185, %184 : vector<2x128xf32>
    %189 = vector.extract_strided_slice %188 {offsets = [0, 96], sizes = [2, 32], strides = [1, 1]} : vector<2x128xf32> to vector<2x32xf32>
    %190 = arith.mulf %186, %172 : vector<2x32xf32>
    %191 = arith.addf %190, %189 : vector<2x32xf32>
    %192 = math.tanh %191 : vector<2x32xf32>
    %193 = arith.mulf %187, %192 : vector<2x32xf32>
    %c2 = arith.constant 2 : index
    %c0_42 = arith.constant 0 : index
    %194 = vector.load %arg3[%c2, %c0_42] : memref<16x32xf32, #tpu.memory_space<vmem>>, vector<2x32xf32>
    tpu.vector_store %arg3[%c2, %c0_42], %193 {strides = array<i32>} : memref<16x32xf32, #tpu.memory_space<vmem>>, vector<2x32xf32>,
    %cst_43 = arith.constant dense<0.000000e+00> : vector<2x128xf32>
    %195 = tpu.matmul %193, %3, %cst_43 {dimension_numbers = #tpu.dot_dimension_numbers<[1], [0], [0], [1], [0, 0, 1, 1], [], []>} : vector<2x32xf32>, vector<32x128xf32>, vector<2x128xf32> -> vector<2x128xf32>
    %196 = vector.broadcast %4 : vector<1x128xf32> to vector<2x128xf32>
    %197 = arith.addf %196, %195 : vector<2x128xf32>
    %198 = arith.negf %197 : vector<2x128xf32>
    %199 = math.exp %198 : vector<2x128xf32>
    %cst_44 = arith.constant 1.000000e+00 : f32
    %200 = vector.broadcast %cst_44 : f32 to vector<2x128xf32>
    %201 = arith.addf %200, %199 : vector<2x128xf32>
    %202 = arith.divf %200, %201 : vector<2x128xf32>
    %203 = math.tanh %197 : vector<2x128xf32>
    %c64_i32_45 = arith.constant 64 : i32
    %204 = tpu.dynamic_rotate %202 by %c64_i32_45 dim 1 : vector<2x128xf32>, i32 -> vector<2x128xf32>
    %205 = vector.extract_strided_slice %202 {offsets = [0, 0], sizes = [2, 32], strides = [1, 1]} : vector<2x128xf32> to vector<2x32xf32>
    %206 = vector.extract_strided_slice %204 {offsets = [0, 0], sizes = [2, 32], strides = [1, 1]} : vector<2x128xf32> to vector<2x32xf32>
    %207 = arith.mulf %204, %203 : vector<2x128xf32>
    %208 = vector.extract_strided_slice %207 {offsets = [0, 96], sizes = [2, 32], strides = [1, 1]} : vector<2x128xf32> to vector<2x32xf32>
    %209 = arith.mulf %205, %191 : vector<2x32xf32>
    %210 = arith.addf %209, %208 : vector<2x32xf32>
    %211 = math.tanh %210 : vector<2x32xf32>
    %212 = arith.mulf %206, %211 : vector<2x32xf32>
    %c4 = arith.constant 4 : index
    %c0_46 = arith.constant 0 : index
    %213 = vector.load %arg3[%c4, %c0_46] : memref<16x32xf32, #tpu.memory_space<vmem>>, vector<2x32xf32>
    tpu.vector_store %arg3[%c4, %c0_46], %212 {strides = array<i32>} : memref<16x32xf32, #tpu.memory_space<vmem>>, vector<2x32xf32>,
    %cst_47 = arith.constant dense<0.000000e+00> : vector<2x128xf32>
    %214 = tpu.matmul %212, %3, %cst_47 {dimension_numbers = #tpu.dot_dimension_numbers<[1], [0], [0], [1], [0, 0, 1, 1], [], []>} : vector<2x32xf32>, vector<32x128xf32>, vector<2x128xf32> -> vector<2x128xf32>
    %215 = vector.broadcast %4 : vector<1x128xf32> to vector<2x128xf32>
    %216 = arith.addf %215, %214 : vector<2x128xf32>
    %217 = arith.negf %216 : vector<2x128xf32>
    %218 = math.exp %217 : vector<2x128xf32>
    %cst_48 = arith.constant 1.000000e+00 : f32
    %219 = vector.broadcast %cst_48 : f32 to vector<2x128xf32>
    %220 = arith.addf %219, %218 : vector<2x128xf32>
    %221 = arith.divf %219, %220 : vector<2x128xf32>
    %222 = math.tanh %216 : vector<2x128xf32>
    %c64_i32_49 = arith.constant 64 : i32
    %223 = tpu.dynamic_rotate %221 by %c64_i32_49 dim 1 : vector<2x128xf32>, i32 -> vector<2x128xf32>
    %224 = vector.extract_strided_slice %221 {offsets = [0, 0], sizes = [2, 32], strides = [1, 1]} : vector<2x128xf32> to vector<2x32xf32>
    %225 = vector.extract_strided_slice %223 {offsets = [0, 0], sizes = [2, 32], strides = [1, 1]} : vector<2x128xf32> to vector<2x32xf32>
    %226 = arith.mulf %223, %222 : vector<2x128xf32>
    %227 = vector.extract_strided_slice %226 {offsets = [0, 96], sizes = [2, 32], strides = [1, 1]} : vector<2x128xf32> to vector<2x32xf32>
    %228 = arith.mulf %224, %210 : vector<2x32xf32>
    %229 = arith.addf %228, %227 : vector<2x32xf32>
    %230 = math.tanh %229 : vector<2x32xf32>
    %231 = arith.mulf %225, %230 : vector<2x32xf32>
    %c6 = arith.constant 6 : index
    %c0_50 = arith.constant 0 : index
    %232 = vector.load %arg3[%c6, %c0_50] : memref<16x32xf32, #tpu.memory_space<vmem>>, vector<2x32xf32>
    tpu.vector_store %arg3[%c6, %c0_50], %231 {strides = array<i32>} : memref<16x32xf32, #tpu.memory_space<vmem>>, vector<2x32xf32>,
    %cst_51 = arith.constant dense<0.000000e+00> : vector<2x128xf32>
    %233 = tpu.matmul %231, %3, %cst_51 {dimension_numbers = #tpu.dot_dimension_numbers<[1], [0], [0], [1], [0, 0, 1, 1], [], []>} : vector<2x32xf32>, vector<32x128xf32>, vector<2x128xf32> -> vector<2x128xf32>
    %234 = vector.broadcast %4 : vector<1x128xf32> to vector<2x128xf32>
    %235 = arith.addf %234, %233 : vector<2x128xf32>
    %236 = arith.negf %235 : vector<2x128xf32>
    %237 = math.exp %236 : vector<2x128xf32>
    %cst_52 = arith.constant 1.000000e+00 : f32
    %238 = vector.broadcast %cst_52 : f32 to vector<2x128xf32>
    %239 = arith.addf %238, %237 : vector<2x128xf32>
    %240 = arith.divf %238, %239 : vector<2x128xf32>
    %241 = math.tanh %235 : vector<2x128xf32>
    %c64_i32_53 = arith.constant 64 : i32
    %242 = tpu.dynamic_rotate %240 by %c64_i32_53 dim 1 : vector<2x128xf32>, i32 -> vector<2x128xf32>
    %243 = vector.extract_strided_slice %240 {offsets = [0, 0], sizes = [2, 32], strides = [1, 1]} : vector<2x128xf32> to vector<2x32xf32>
    %244 = vector.extract_strided_slice %242 {offsets = [0, 0], sizes = [2, 32], strides = [1, 1]} : vector<2x128xf32> to vector<2x32xf32>
    %245 = arith.mulf %242, %241 : vector<2x128xf32>
    %246 = vector.extract_strided_slice %245 {offsets = [0, 96], sizes = [2, 32], strides = [1, 1]} : vector<2x128xf32> to vector<2x32xf32>
    %247 = arith.mulf %243, %229 : vector<2x32xf32>
    %248 = arith.addf %247, %246 : vector<2x32xf32>
    %249 = math.tanh %248 : vector<2x32xf32>
    %250 = arith.mulf %244, %249 : vector<2x32xf32>
    %c8_54 = arith.constant 8 : index
    %c0_55 = arith.constant 0 : index
    %251 = vector.load %arg3[%c8_54, %c0_55] : memref<16x32xf32, #tpu.memory_space<vmem>>, vector<2x32xf32>
    tpu.vector_store %arg3[%c8_54, %c0_55], %250 {strides = array<i32>} : memref<16x32xf32, #tpu.memory_space<vmem>>, vector<2x32xf32>,
    %cst_56 = arith.constant dense<0.000000e+00> : vector<2x128xf32>
    %252 = tpu.matmul %250, %3, %cst_56 {dimension_numbers = #tpu.dot_dimension_numbers<[1], [0], [0], [1], [0, 0, 1, 1], [], []>} : vector<2x32xf32>, vector<32x128xf32>, vector<2x128xf32> -> vector<2x128xf32>
    %253 = vector.broadcast %4 : vector<1x128xf32> to vector<2x128xf32>
    %254 = arith.addf %253, %252 : vector<2x128xf32>
    %255 = arith.negf %254 : vector<2x128xf32>
    %256 = math.exp %255 : vector<2x128xf32>
    %cst_57 = arith.constant 1.000000e+00 : f32
    %257 = vector.broadcast %cst_57 : f32 to vector<2x128xf32>
    %258 = arith.addf %257, %256 : vector<2x128xf32>
    %259 = arith.divf %257, %258 : vector<2x128xf32>
    %260 = math.tanh %254 : vector<2x128xf32>
    %c64_i32_58 = arith.constant 64 : i32
    %261 = tpu.dynamic_rotate %259 by %c64_i32_58 dim 1 : vector<2x128xf32>, i32 -> vector<2x128xf32>
    %262 = vector.extract_strided_slice %259 {offsets = [0, 0], sizes = [2, 32], strides = [1, 1]} : vector<2x128xf32> to vector<2x32xf32>
    %263 = vector.extract_strided_slice %261 {offsets = [0, 0], sizes = [2, 32], strides = [1, 1]} : vector<2x128xf32> to vector<2x32xf32>
    %264 = arith.mulf %261, %260 : vector<2x128xf32>
    %265 = vector.extract_strided_slice %264 {offsets = [0, 96], sizes = [2, 32], strides = [1, 1]} : vector<2x128xf32> to vector<2x32xf32>
    %266 = arith.mulf %262, %248 : vector<2x32xf32>
    %267 = arith.addf %266, %265 : vector<2x32xf32>
    %268 = math.tanh %267 : vector<2x32xf32>
    %269 = arith.mulf %263, %268 : vector<2x32xf32>
    %c10 = arith.constant 10 : index
    %c0_59 = arith.constant 0 : index
    %270 = vector.load %arg3[%c10, %c0_59] : memref<16x32xf32, #tpu.memory_space<vmem>>, vector<2x32xf32>
    tpu.vector_store %arg3[%c10, %c0_59], %269 {strides = array<i32>} : memref<16x32xf32, #tpu.memory_space<vmem>>, vector<2x32xf32>,
    %cst_60 = arith.constant dense<0.000000e+00> : vector<2x128xf32>
    %271 = tpu.matmul %269, %3, %cst_60 {dimension_numbers = #tpu.dot_dimension_numbers<[1], [0], [0], [1], [0, 0, 1, 1], [], []>} : vector<2x32xf32>, vector<32x128xf32>, vector<2x128xf32> -> vector<2x128xf32>
    %272 = vector.broadcast %4 : vector<1x128xf32> to vector<2x128xf32>
    %273 = arith.addf %272, %271 : vector<2x128xf32>
    %274 = arith.negf %273 : vector<2x128xf32>
    %275 = math.exp %274 : vector<2x128xf32>
    %cst_61 = arith.constant 1.000000e+00 : f32
    %276 = vector.broadcast %cst_61 : f32 to vector<2x128xf32>
    %277 = arith.addf %276, %275 : vector<2x128xf32>
    %278 = arith.divf %276, %277 : vector<2x128xf32>
    %279 = math.tanh %273 : vector<2x128xf32>
    %c64_i32_62 = arith.constant 64 : i32
    %280 = tpu.dynamic_rotate %278 by %c64_i32_62 dim 1 : vector<2x128xf32>, i32 -> vector<2x128xf32>
    %281 = vector.extract_strided_slice %278 {offsets = [0, 0], sizes = [2, 32], strides = [1, 1]} : vector<2x128xf32> to vector<2x32xf32>
    %282 = vector.extract_strided_slice %280 {offsets = [0, 0], sizes = [2, 32], strides = [1, 1]} : vector<2x128xf32> to vector<2x32xf32>
    %283 = arith.mulf %280, %279 : vector<2x128xf32>
    %284 = vector.extract_strided_slice %283 {offsets = [0, 96], sizes = [2, 32], strides = [1, 1]} : vector<2x128xf32> to vector<2x32xf32>
    %285 = arith.mulf %281, %267 : vector<2x32xf32>
    %286 = arith.addf %285, %284 : vector<2x32xf32>
    %287 = math.tanh %286 : vector<2x32xf32>
    %288 = arith.mulf %282, %287 : vector<2x32xf32>
    %c12 = arith.constant 12 : index
    %c0_63 = arith.constant 0 : index
    %289 = vector.load %arg3[%c12, %c0_63] : memref<16x32xf32, #tpu.memory_space<vmem>>, vector<2x32xf32>
    tpu.vector_store %arg3[%c12, %c0_63], %288 {strides = array<i32>} : memref<16x32xf32, #tpu.memory_space<vmem>>, vector<2x32xf32>,
    %cst_64 = arith.constant dense<0.000000e+00> : vector<2x128xf32>
    %290 = tpu.matmul %288, %3, %cst_64 {dimension_numbers = #tpu.dot_dimension_numbers<[1], [0], [0], [1], [0, 0, 1, 1], [], []>} : vector<2x32xf32>, vector<32x128xf32>, vector<2x128xf32> -> vector<2x128xf32>
    %291 = vector.broadcast %4 : vector<1x128xf32> to vector<2x128xf32>
    %292 = arith.addf %291, %290 : vector<2x128xf32>
    %293 = arith.negf %292 : vector<2x128xf32>
    %294 = math.exp %293 : vector<2x128xf32>
    %cst_65 = arith.constant 1.000000e+00 : f32
    %295 = vector.broadcast %cst_65 : f32 to vector<2x128xf32>
    %296 = arith.addf %295, %294 : vector<2x128xf32>
    %297 = arith.divf %295, %296 : vector<2x128xf32>
    %298 = math.tanh %292 : vector<2x128xf32>
    %c64_i32_66 = arith.constant 64 : i32
    %299 = tpu.dynamic_rotate %297 by %c64_i32_66 dim 1 : vector<2x128xf32>, i32 -> vector<2x128xf32>
    %300 = vector.extract_strided_slice %297 {offsets = [0, 0], sizes = [2, 32], strides = [1, 1]} : vector<2x128xf32> to vector<2x32xf32>
    %301 = vector.extract_strided_slice %299 {offsets = [0, 0], sizes = [2, 32], strides = [1, 1]} : vector<2x128xf32> to vector<2x32xf32>
    %302 = arith.mulf %299, %298 : vector<2x128xf32>
    %303 = vector.extract_strided_slice %302 {offsets = [0, 96], sizes = [2, 32], strides = [1, 1]} : vector<2x128xf32> to vector<2x32xf32>
    %304 = arith.mulf %300, %286 : vector<2x32xf32>
    %305 = arith.addf %304, %303 : vector<2x32xf32>
    %306 = math.tanh %305 : vector<2x32xf32>
    %307 = arith.mulf %301, %306 : vector<2x32xf32>
    %c14 = arith.constant 14 : index
    %c0_67 = arith.constant 0 : index
    %308 = vector.load %arg3[%c14, %c0_67] : memref<16x32xf32, #tpu.memory_space<vmem>>, vector<2x32xf32>
    tpu.vector_store %arg3[%c14, %c0_67], %307 {strides = array<i32>} : memref<16x32xf32, #tpu.memory_space<vmem>>, vector<2x32xf32>,
    %c0_68 = arith.constant 0 : index
    %c0_69 = arith.constant 0 : index
    %309 = vector.load %arg3[%c0_68, %c0_69] : memref<16x32xf32, #tpu.memory_space<vmem>>, vector<16x32xf32>
    %cst_70 = arith.constant dense<0.000000e+00> : vector<16x128xf32>
    %310 = tpu.matmul %309, %5, %cst_70 {dimension_numbers = #tpu.dot_dimension_numbers<[1], [0], [0], [1], [0, 0, 1, 1], [], []>} : vector<16x32xf32>, vector<32x128xf32>, vector<16x128xf32> -> vector<16x128xf32>
    %311 = vector.broadcast %6 : vector<1x128xf32> to vector<16x128xf32>
    %312 = arith.addf %310, %311 : vector<16x128xf32>
    %313 = vector.extract_strided_slice %312 {offsets = [0, 0], sizes = [16, 6], strides = [1, 1]} : vector<16x128xf32> to vector<16x6xf32>
    %c0_71 = arith.constant 0 : index
    %c0_72 = arith.constant 0 : index
    %314 = vector.load %arg2[%c0_71, %c0_72] : memref<16x6xf32, #tpu.memory_space<vmem>>, vector<16x6xf32>
    tpu.vector_store %arg2[%c0_71, %c0_72], %313 {strides = array<i32>} : memref<16x6xf32, #tpu.memory_space<vmem>>, vector<16x6xf32>,
    return
  }
}

</mosaic_0001>

<llo_original>
// kernel: seq2seq1_forward.1
$region0: #{seq2seq1_forward.1}
  #allocation0 [shape = 'u32[]', space=smem, size = 0x4, offset = 0x4, fixed_abs, tag = 'smem constant byte address 0x4 - core index']
  #allocation1 [shape = 'u32[72,128]{1,0:T(1,128)}', space=vmem, size = 0x9000, scoped, tag = 'internal scratch']
  #allocation2 [shape = 'f32[16,32]{1,0:T(8,128)}', space=vmem, size = 0x2000, scoped, tag = 'scratch operand']
  %s0 = inlined_call_operand.vmem [shape: f32[16,4], index: 0, kind: input, shape index: {}]
  %s1 = inlined_call_operand.vmem [shape: f32[128,128], index: 1, kind: input, shape index: {}]
  %s2 = inlined_call_operand.vmem [shape: f32[16,6], index: 2, kind: output, shape index: {}]
  %s3 = sld [smem:[#allocation0]]
  $region18: #{seq2seq1_forward.1} parent=0
    _
  %s5 = ssub.s32 1, %s3
  %s6 = scalar_select 0, %s5, %s3
  // Predicated region
  $region2: #{seq2seq1_forward.1} parent=0 // pred_check
    _
  $region3: #{seq2seq1_forward.1} parent=0 // pred_check_branch
    %8 = sbr.rel (0) target = $region5
  $region4: #{seq2seq1_forward.1} parent=0 // pred_region
    _
  $region5: #{seq2seq1_forward.1} parent=0 // pred_fallthru
    _
  // Predicated region
  $region6: #{seq2seq1_forward.1} parent=0 // pred_check
    _
  $region7: #{seq2seq1_forward.1} parent=0 // pred_check_branch
    %10 = sbr.rel (0) target = $region9
  $region8: #{seq2seq1_forward.1} parent=0 // pred_region
    _
  $region9: #{seq2seq1_forward.1} parent=0 // pred_fallthru
    _
  %v11 = vld [vmem:[%s1] sm:$0xf]
  %v12 = vld [vmem:[%s1 + $0x8] sm:$0xff]
  %v13 = vld [vmem:[%s1 + $0x10] sm:$0xff]
  %v14 = vld [vmem:[%s1 + $0x18] sm:$0xff]
  %v15 = vld [vmem:[%s1 + $0x20] sm:$0xff]
  %v16 = vld [vmem:[%s1 + $0x28] sm:$0x1]
  %v17 = vld [vmem:[%s1 + $0x30] sm:$0xff]
  %v18 = vld [vmem:[%s1 + $0x38] sm:$0xff]
  %v19 = vld [vmem:[%s1 + $0x40] sm:$0xff]
  %v20 = vld [vmem:[%s1 + $0x48] sm:$0xff]
  %v21 = vld [vmem:[%s1 + $0x50] sm:$0x1]
  %v22 = vld [vmem:[%s1 + $0x58] sm:$0xff]
  %v23 = vld [vmem:[%s1 + $0x60] sm:$0xff]
  %v24 = vld [vmem:[%s1 + $0x68] sm:$0xff]
  %v25 = vld [vmem:[%s1 + $0x70] sm:$0xff]
  %v26 = vld [vmem:[%s1 + $0x78] sm:$0x1]
  %v27 = vld [vmem:[%s0] sm:$0xff]
  %v28 = vld [vmem:[%s0 + $0x8] sm:$0xff]
  %v29 = vperm.slane %v16, 0
  %vm30 = vcmask 31744
  %v32 = vsel %vm30, %v27, 0
  %v35 = vsel %vm30, %v28, 0
  %vm37 = vcmask 1043456
  %v39 = vsel %vm37, %v11, 0
  %41 = vmatpush.msra.mxu0 0.0
  %42 = vmatpush.msra.mxu0 0.0
  %43 = vmatpush.msra.mxu0 0.0
  %44 = vmatpush.msra.mxu0 0.0
  %45 = vmatpush.msra.mxu0 0.0
  %46 = vmatpush.msra.mxu0 0.0
  %47 = vmatpush.msra.mxu0 0.0
  %48 = vmatpush.msra.mxu0 0.0
  %49 = vmatpush.msra.mxu0 0.0
  %50 = vmatpush.msra.mxu0 0.0
  %51 = vmatpush.msra.mxu0 0.0
  %52 = vmatpush.msra.mxu0 0.0
  %53 = vmatpush.msra.mxu0 0.0
  %54 = vmatpush.msra.mxu0 0.0
  %55 = vmatpush.msra.mxu0 0.0
  %56 = vmatpush.msra.mxu0 %v39
  %57 = vmatmul.f32.gmra.mxu0 %v32
  %v58 = vpop.f32.mrf.mxu0
  %v59 = vadd.f32 %v29, %v58
  %60 = vmatmul.f32.gmra.mxu0 %v35
  %v61 = vpop.f32.mrf.mxu0
  %v62 = vadd.f32 %v29, %v61
  %63 = vdwg.mxu0
  %vm64 = vcmask 261120
  %v66 = vsel %vm64, 0.0, 0
  %68 = vmatpush.msra.mxu0 0.0
  %69 = vmatpush.msra.mxu0 0.0
  %70 = vmatpush.msra.mxu0 0.0
  %71 = vmatpush.msra.mxu0 0.0
  %72 = vmatpush.msra.mxu0 0.0
  %73 = vmatpush.msra.mxu0 0.0
  %74 = vmatpush.msra.mxu0 0.0
  %75 = vmatpush.msra.mxu0 0.0
  %76 = vmatpush.msra.mxu0 0.0
  %77 = vmatpush.msra.mxu0 0.0
  %78 = vmatpush.msra.mxu0 0.0
  %79 = vmatpush.msra.mxu0 0.0
  %80 = vmatpush.msra.mxu0 %v15
  %81 = vmatpush.msra.mxu0 %v14
  %82 = vmatpush.msra.mxu0 %v13
  %83 = vmatpush.msra.mxu0 %v12
  %84 = vmatmul.f32.gmra.mxu0 %v66
  %v85 = vpop.f32.mrf.mxu0
  %v86 = vadd.f32 0.0, %v85
  %87 = vdwg.mxu0
  %v88 = vadd.f32 %v59, %v86
  %v89 = vxor.u32 %v88, 2147483648
  %v90 = vmul.f32 %v89, 1.442695
  %v91 = vpow.pop %v90
  %v92 = vadd.f32 %v91, 1.0
  %v93 = vrcp.pop %v92
  %v94 = vmul.f32 %v92, %v93
  %v95 = vsub.f32 1.0, %v94
  %v96 = vmul.f32 %v93, %v95
  %v97 = vadd.f32 %v93, %v96
  %vm98 = vweird.f32 %v92
  %vm99 = vweird.f32 %v93
  %vm100 = vmor %vm98, %vm99
  %v101 = vsel %vm100, %v93, %v97
  %v102 = vand.u32 2147483647, %v92
  %vm103 = vcmp.eq.f32.partialorder %v102, 8.507059e+37
  %v104 = vand.u32 %v92, 2147483648
  %v105 = vor.u32 1.1754944e-38, %v104
  %v106 = vsel %vm103, %v105, %v101
  %v107 = vmul.f32 1.0, %v106
  %v108 = vtanh.pop %v88
  %109 = vrot.lane.b32.xlu0 %v107, 64
  %v110 = vpop.permute.xlu0 %109
  %v111 = vmul.f32 %v110, %v108
  %v112 = vmul.f32 %v107, 0.0
  %114 = vrot.lane.b32.xlu0 %v111, 32
  %v115 = vpop.permute.xlu0 %114
  %v117 = vadd.f32 %v112, %v115
  %v118 = vtanh.pop %v117
  %v119 = vmul.f32 %v110, %v118
  %v121 = vsel %vm64, %v119, 0
  %123 = vmatpush.msra.mxu0 0.0
  %124 = vmatpush.msra.mxu0 0.0
  %125 = vmatpush.msra.mxu0 0.0
  %126 = vmatpush.msra.mxu0 0.0
  %127 = vmatpush.msra.mxu0 0.0
  %128 = vmatpush.msra.mxu0 0.0
  %129 = vmatpush.msra.mxu0 0.0
  %130 = vmatpush.msra.mxu0 0.0
  %131 = vmatpush.msra.mxu0 0.0
  %132 = vmatpush.msra.mxu0 0.0
  %133 = vmatpush.msra.mxu0 0.0
  %134 = vmatpush.msra.mxu0 0.0
  %135 = vmatpush.msra.mxu0 %v15
  %136 = vmatpush.msra.mxu0 %v14
  %137 = vmatpush.msra.mxu0 %v13
  %138 = vmatpush.msra.mxu0 %v12
  %139 = vmatmul.f32.gmra.mxu0 %v121
  %v140 = vpop.f32.mrf.mxu0
  %v141 = vadd.f32 0.0, %v140
  %142 = vdwg.mxu0
  %v144 = vrot.slane %v141, 6
  %v146 = vadd.f32 %v59, %v144
  %v147 = vxor.u32 %v146, 2147483648
  %v148 = vmul.f32 %v147, 1.442695
  %v149 = vpow.pop %v148
  %v150 = vadd.f32 %v149, 1.0
  %v151 = vrcp.pop %v150
  %v152 = vmul.f32 %v150, %v151
  %v153 = vsub.f32 1.0, %v152
  %v154 = vmul.f32 %v151, %v153
  %v155 = vadd.f32 %v151, %v154
  %vm156 = vweird.f32 %v150
  %vm157 = vweird.f32 %v151
  %vm158 = vmor %vm156, %vm157
  %v159 = vsel %vm158, %v151, %v155
  %v160 = vand.u32 2147483647, %v150
  %vm161 = vcmp.eq.f32.partialorder %v160, 8.507059e+37
  %v162 = vand.u32 %v150, 2147483648
  %v163 = vor.u32 1.1754944e-38, %v162
  %v164 = vsel %vm161, %v163, %v159
  %v165 = vmul.f32 1.0, %v164
  %v166 = vtanh.pop %v146
  %v168 = vrot.slane %v165, 2
  %170 = vrot.lane.b32.xlu0 %v168, 64
  %v171 = vpop.permute.xlu0 %170
  %v173 = vrot.slane %v166, 2
  %v175 = vmul.f32 %v171, %v173
  %v177 = vrot.slane %v117, 6
  %v179 = vmul.f32 %v165, %v177
  %v181 = vrot.slane %v175, 6
  %182 = vrot.lane.b32.xlu0 %v181, 32
  %v183 = vpop.permute.xlu0 %182
  %v185 = vadd.f32 %v179, %v183
  %v186 = vtanh.pop %v185
  %v188 = vrot.slane %v186, 2
  %v190 = vmul.f32 %v171, %v188
  %v192 = vsel %vm64, %v190, 0
  %194 = vmatpush.msra.mxu0 0.0
  %195 = vmatpush.msra.mxu0 0.0
  %196 = vmatpush.msra.mxu0 0.0
  %197 = vmatpush.msra.mxu0 0.0
  %198 = vmatpush.msra.mxu0 0.0
  %199 = vmatpush.msra.mxu0 0.0
  %200 = vmatpush.msra.mxu0 0.0
  %201 = vmatpush.msra.mxu0 0.0
  %202 = vmatpush.msra.mxu0 0.0
  %203 = vmatpush.msra.mxu0 0.0
  %204 = vmatpush.msra.mxu0 0.0
  %205 = vmatpush.msra.mxu0 0.0
  %206 = vmatpush.msra.mxu0 %v15
  %207 = vmatpush.msra.mxu0 %v14
  %208 = vmatpush.msra.mxu0 %v13
  %209 = vmatpush.msra.mxu0 %v12
  %210 = vmatmul.f32.gmra.mxu0 %v192
  %v211 = vpop.f32.mrf.mxu0
  %v212 = vadd.f32 0.0, %v211
  %213 = vdwg.mxu0
  %v215 = vrot.slane %v212, 4
  %v217 = vadd.f32 %v59, %v215
  %v218 = vxor.u32 %v217, 2147483648
  %v219 = vmul.f32 %v218, 1.442695
  %v220 = vpow.pop %v219
  %v221 = vadd.f32 %v220, 1.0
  %v222 = vrcp.pop %v221
  %v223 = vmul.f32 %v221, %v222
  %v224 = vsub.f32 1.0, %v223
  %v225 = vmul.f32 %v222, %v224
  %v226 = vadd.f32 %v222, %v225
  %vm227 = vweird.f32 %v221
  %vm228 = vweird.f32 %v222
  %vm229 = vmor %vm227, %vm228
  %v230 = vsel %vm229, %v222, %v226
  %v231 = vand.u32 2147483647, %v221
  %vm232 = vcmp.eq.f32.partialorder %v231, 8.507059e+37
  %v233 = vand.u32 %v221, 2147483648
  %v234 = vor.u32 1.1754944e-38, %v233
  %v235 = vsel %vm232, %v234, %v230
  %v236 = vmul.f32 1.0, %v235
  %v237 = vtanh.pop %v217
  %v239 = vrot.slane %v236, 4
  %241 = vrot.lane.b32.xlu0 %v239, 64
  %v242 = vpop.permute.xlu0 %241
  %v244 = vrot.slane %v237, 4
  %v246 = vmul.f32 %v242, %v244
  %v248 = vrot.slane %v185, 6
  %v250 = vmul.f32 %v236, %v248
  %v252 = vrot.slane %v246, 4
  %253 = vrot.lane.b32.xlu0 %v252, 32
  %v254 = vpop.permute.xlu0 %253
  %v256 = vadd.f32 %v250, %v254
  %v257 = vtanh.pop %v256
  %v259 = vrot.slane %v257, 4
  %v261 = vmul.f32 %v242, %v259
  %v263 = vsel %vm64, %v261, 0
  %265 = vmatpush.msra.mxu0 0.0
  %266 = vmatpush.msra.mxu0 0.0
  %267 = vmatpush.msra.mxu0 0.0
  %268 = vmatpush.msra.mxu0 0.0
  %269 = vmatpush.msra.mxu0 0.0
  %270 = vmatpush.msra.mxu0 0.0
  %271 = vmatpush.msra.mxu0 0.0
  %272 = vmatpush.msra.mxu0 0.0
  %273 = vmatpush.msra.mxu0 0.0
  %274 = vmatpush.msra.mxu0 0.0
  %275 = vmatpush.msra.mxu0 0.0
  %276 = vmatpush.msra.mxu0 0.0
  %277 = vmatpush.msra.mxu0 %v15
  %278 = vmatpush.msra.mxu0 %v14
  %279 = vmatpush.msra.mxu0 %v13
  %280 = vmatpush.msra.mxu0 %v12
  %281 = vmatmul.f32.gmra.mxu0 %v263
  %v282 = vpop.f32.mrf.mxu0
  %v283 = vadd.f32 0.0, %v282
  %284 = vdwg.mxu0
  %v286 = vrot.slane %v283, 2
  %v288 = vadd.f32 %v59, %v286
  %v289 = vxor.u32 %v288, 2147483648
  %v290 = vmul.f32 %v289, 1.442695
  %v291 = vpow.pop %v290
  %v292 = vadd.f32 %v291, 1.0
  %v293 = vrcp.pop %v292
  %v294 = vmul.f32 %v292, %v293
  %v295 = vsub.f32 1.0, %v294
  %v296 = vmul.f32 %v293, %v295
  %v297 = vadd.f32 %v293, %v296
  %vm298 = vweird.f32 %v292
  %vm299 = vweird.f32 %v293
  %vm300 = vmor %vm298, %vm299
  %v301 = vsel %vm300, %v293, %v297
  %v302 = vand.u32 2147483647, %v292
  %vm303 = vcmp.eq.f32.partialorder %v302, 8.507059e+37
  %v304 = vand.u32 %v292, 2147483648
  %v305 = vor.u32 1.1754944e-38, %v304
  %v306 = vsel %vm303, %v305, %v301
  %v307 = vmul.f32 1.0, %v306
  %v308 = vtanh.pop %v288
  %v310 = vrot.slane %v307, 6
  %312 = vrot.lane.b32.xlu0 %v310, 64
  %v313 = vpop.permute.xlu0 %312
  %v315 = vrot.slane %v308, 6
  %v317 = vmul.f32 %v313, %v315
  %v319 = vrot.slane %v256, 6
  %v321 = vmul.f32 %v307, %v319
  %v323 = vrot.slane %v317, 2
  %324 = vrot.lane.b32.xlu0 %v323, 32
  %v325 = vpop.permute.xlu0 %324
  %v327 = vadd.f32 %v321, %v325
  %v328 = vtanh.pop %v327
  %v330 = vrot.slane %v328, 6
  %v332 = vmul.f32 %v313, %v330
  %v334 = vsel %vm64, %v332, 0
  %336 = vmatpush.msra.mxu0 0.0
  %337 = vmatpush.msra.mxu0 0.0
  %338 = vmatpush.msra.mxu0 0.0
  %339 = vmatpush.msra.mxu0 0.0
  %340 = vmatpush.msra.mxu0 0.0
  %341 = vmatpush.msra.mxu0 0.0
  %342 = vmatpush.msra.mxu0 0.0
  %343 = vmatpush.msra.mxu0 0.0
  %344 = vmatpush.msra.mxu0 0.0
  %345 = vmatpush.msra.mxu0 0.0
  %346 = vmatpush.msra.mxu0 0.0
  %347 = vmatpush.msra.mxu0 0.0
  %348 = vmatpush.msra.mxu0 %v15
  %349 = vmatpush.msra.mxu0 %v14
  %350 = vmatpush.msra.mxu0 %v13
  %351 = vmatpush.msra.mxu0 %v12
  %352 = vmatmul.f32.gmra.mxu0 %v334
  %v353 = vpop.f32.mrf.mxu0
  %v354 = vadd.f32 0.0, %v353
  %355 = vdwg.mxu0
  %v356 = vadd.f32 %v62, %v354
  %v357 = vxor.u32 %v356, 2147483648
  %v358 = vmul.f32 %v357, 1.442695
  %v359 = vpow.pop %v358
  %v360 = vadd.f32 %v359, 1.0
  %v361 = vrcp.pop %v360
  %v362 = vmul.f32 %v360, %v361
  %v363 = vsub.f32 1.0, %v362
  %v364 = vmul.f32 %v361, %v363
  %v365 = vadd.f32 %v361, %v364
  %vm366 = vweird.f32 %v360
  %vm367 = vweird.f32 %v361
  %vm368 = vmor %vm366, %vm367
  %v369 = vsel %vm368, %v361, %v365
  %v370 = vand.u32 2147483647, %v360
  %vm371 = vcmp.eq.f32.partialorder %v370, 8.507059e+37
  %v372 = vand.u32 %v360, 2147483648
  %v373 = vor.u32 1.1754944e-38, %v372
  %v374 = vsel %vm371, %v373, %v369
  %v375 = vmul.f32 1.0, %v374
  %v376 = vtanh.pop %v356
  %377 = vrot.lane.b32.xlu0 %v375, 64
  %v378 = vpop.permute.xlu0 %377
  %v379 = vmul.f32 %v378, %v376
  %v381 = vrot.slane %v327, 6
  %v383 = vmul.f32 %v375, %v381
  %385 = vrot.lane.b32.xlu0 %v379, 32
  %v386 = vpop.permute.xlu0 %385
  %v388 = vadd.f32 %v383, %v386
  %v389 = vtanh.pop %v388
  %v390 = vmul.f32 %v378, %v389
  %v392 = vsel %vm64, %v390, 0
  %394 = vmatpush.msra.mxu0 0.0
  %395 = vmatpush.msra.mxu0 0.0
  %396 = vmatpush.msra.mxu0 0.0
  %397 = vmatpush.msra.mxu0 0.0
  %398 = vmatpush.msra.mxu0 0.0
  %399 = vmatpush.msra.mxu0 0.0
  %400 = vmatpush.msra.mxu0 0.0
  %401 = vmatpush.msra.mxu0 0.0
  %402 = vmatpush.msra.mxu0 0.0
  %403 = vmatpush.msra.mxu0 0.0
  %404 = vmatpush.msra.mxu0 0.0
  %405 = vmatpush.msra.mxu0 0.0
  %406 = vmatpush.msra.mxu0 %v15
  %407 = vmatpush.msra.mxu0 %v14
  %408 = vmatpush.msra.mxu0 %v13
  %409 = vmatpush.msra.mxu0 %v12
  %410 = vmatmul.f32.gmra.mxu0 %v392
  %v411 = vpop.f32.mrf.mxu0
  %v412 = vadd.f32 0.0, %v411
  %413 = vdwg.mxu0
  %v415 = vrot.slane %v412, 6
  %v417 = vadd.f32 %v62, %v415
  %v418 = vxor.u32 %v417, 2147483648
  %v419 = vmul.f32 %v418, 1.442695
  %v420 = vpow.pop %v419
  %v421 = vadd.f32 %v420, 1.0
  %v422 = vrcp.pop %v421
  %v423 = vmul.f32 %v421, %v422
  %v424 = vsub.f32 1.0, %v423
  %v425 = vmul.f32 %v422, %v424
  %v426 = vadd.f32 %v422, %v425
  %vm427 = vweird.f32 %v421
  %vm428 = vweird.f32 %v422
  %vm429 = vmor %vm427, %vm428
  %v430 = vsel %vm429, %v422, %v426
  %v431 = vand.u32 2147483647, %v421
  %vm432 = vcmp.eq.f32.partialorder %v431, 8.507059e+37
  %v433 = vand.u32 %v421, 2147483648
  %v434 = vor.u32 1.1754944e-38, %v433
  %v435 = vsel %vm432, %v434, %v430
  %v436 = vmul.f32 1.0, %v435
  %v437 = vtanh.pop %v417
  %v439 = vrot.slane %v436, 2
  %441 = vrot.lane.b32.xlu0 %v439, 64
  %v442 = vpop.permute.xlu0 %441
  %v444 = vrot.slane %v437, 2
  %v446 = vmul.f32 %v442, %v444
  %v448 = vrot.slane %v388, 6
  %v450 = vmul.f32 %v436, %v448
  %v452 = vrot.slane %v446, 6
  %453 = vrot.lane.b32.xlu0 %v452, 32
  %v454 = vpop.permute.xlu0 %453
  %v456 = vadd.f32 %v450, %v454
  %v457 = vtanh.pop %v456
  %v459 = vrot.slane %v457, 2
  %v461 = vmul.f32 %v442, %v459
  %v463 = vsel %vm64, %v461, 0
  %465 = vmatpush.msra.mxu0 0.0
  %466 = vmatpush.msra.mxu0 0.0
  %467 = vmatpush.msra.mxu0 0.0
  %468 = vmatpush.msra.mxu0 0.0
  %469 = vmatpush.msra.mxu0 0.0
  %470 = vmatpush.msra.mxu0 0.0
  %471 = vmatpush.msra.mxu0 0.0
  %472 = vmatpush.msra.mxu0 0.0
  %473 = vmatpush.msra.mxu0 0.0
  %474 = vmatpush.msra.mxu0 0.0
  %475 = vmatpush.msra.mxu0 0.0
  %476 = vmatpush.msra.mxu0 0.0
  %477 = vmatpush.msra.mxu0 %v15
  %478 = vmatpush.msra.mxu0 %v14
  %479 = vmatpush.msra.mxu0 %v13
  %480 = vmatpush.msra.mxu0 %v12
  %481 = vmatmul.f32.gmra.mxu0 %v463
  %v482 = vpop.f32.mrf.mxu0
  %v483 = vadd.f32 0.0, %v482
  %484 = vdwg.mxu0
  %v486 = vrot.slane %v483, 4
  %v488 = vadd.f32 %v62, %v486
  %v489 = vxor.u32 %v488, 2147483648
  %v490 = vmul.f32 %v489, 1.442695
  %v491 = vpow.pop %v490
  %v492 = vadd.f32 %v491, 1.0
  %v493 = vrcp.pop %v492
  %v494 = vmul.f32 %v492, %v493
  %v495 = vsub.f32 1.0, %v494
  %v496 = vmul.f32 %v493, %v495
  %v497 = vadd.f32 %v493, %v496
  %vm498 = vweird.f32 %v492
  %vm499 = vweird.f32 %v493
  %vm500 = vmor %vm498, %vm499
  %v501 = vsel %vm500, %v493, %v497
  %v502 = vand.u32 2147483647, %v492
  %vm503 = vcmp.eq.f32.partialorder %v502, 8.507059e+37
  %v504 = vand.u32 %v492, 2147483648
  %v505 = vor.u32 1.1754944e-38, %v504
  %v506 = vsel %vm503, %v505, %v501
  %v507 = vmul.f32 1.0, %v506
  %v508 = vtanh.pop %v488
  %v510 = vrot.slane %v507, 4
  %512 = vrot.lane.b32.xlu0 %v510, 64
  %v513 = vpop.permute.xlu0 %512
  %v515 = vrot.slane %v508, 4
  %v517 = vmul.f32 %v513, %v515
  %v519 = vrot.slane %v456, 6
  %v521 = vmul.f32 %v507, %v519
  %v523 = vrot.slane %v517, 4
  %524 = vrot.lane.b32.xlu0 %v523, 32
  %v525 = vpop.permute.xlu0 %524
  %v527 = vadd.f32 %v521, %v525
  %v528 = vtanh.pop %v527
  %v530 = vrot.slane %v528, 4
  %v532 = vmul.f32 %v513, %v530
  %v534 = vsel %vm64, %v532, 0
  %536 = vmatpush.msra.mxu0 0.0
  %537 = vmatpush.msra.mxu0 0.0
  %538 = vmatpush.msra.mxu0 0.0
  %539 = vmatpush.msra.mxu0 0.0
  %540 = vmatpush.msra.mxu0 0.0
  %541 = vmatpush.msra.mxu0 0.0
  %542 = vmatpush.msra.mxu0 0.0
  %543 = vmatpush.msra.mxu0 0.0
  %544 = vmatpush.msra.mxu0 0.0
  %545 = vmatpush.msra.mxu0 0.0
  %546 = vmatpush.msra.mxu0 0.0
  %547 = vmatpush.msra.mxu0 0.0
  %548 = vmatpush.msra.mxu0 %v15
  %549 = vmatpush.msra.mxu0 %v14
  %550 = vmatpush.msra.mxu0 %v13
  %551 = vmatpush.msra.mxu0 %v12
  %552 = vmatmul.f32.gmra.mxu0 %v534
  %v553 = vpop.f32.mrf.mxu0
  %v554 = vadd.f32 0.0, %v553
  %555 = vdwg.mxu0
  %v557 = vrot.slane %v554, 2
  %v559 = vadd.f32 %v62, %v557
  %v560 = vxor.u32 %v559, 2147483648
  %v561 = vmul.f32 %v560, 1.442695
  %v562 = vpow.pop %v561
  %v563 = vadd.f32 %v562, 1.0
  %v564 = vrcp.pop %v563
  %v565 = vmul.f32 %v563, %v564
  %v566 = vsub.f32 1.0, %v565
  %v567 = vmul.f32 %v564, %v566
  %v568 = vadd.f32 %v564, %v567
  %vm569 = vweird.f32 %v563
  %vm570 = vweird.f32 %v564
  %vm571 = vmor %vm569, %vm570
  %v572 = vsel %vm571, %v564, %v568
  %v573 = vand.u32 2147483647, %v563
  %vm574 = vcmp.eq.f32.partialorder %v573, 8.507059e+37
  %v575 = vand.u32 %v563, 2147483648
  %v576 = vor.u32 1.1754944e-38, %v575
  %v577 = vsel %vm574, %v576, %v572
  %v578 = vmul.f32 1.0, %v577
  %v579 = vtanh.pop %v559
  %v581 = vrot.slane %v578, 6
  %583 = vrot.lane.b32.xlu0 %v581, 64
  %v584 = vpop.permute.xlu0 %583
  %v586 = vrot.slane %v579, 6
  %v588 = vmul.f32 %v584, %v586
  %v590 = vrot.slane %v527, 6
  %v592 = vmul.f32 %v578, %v590
  %v594 = vrot.slane %v588, 2
  %595 = vrot.lane.b32.xlu0 %v594, 32
  %v596 = vpop.permute.xlu0 %595
  %v598 = vadd.f32 %v592, %v596
  %v599 = vtanh.pop %v598
  %v601 = vrot.slane %v599, 6
  %v603 = vmul.f32 %v584, %v601
  %v605 = vsel %vm64, %v603, 0
  %607 = vmatpush.msra.mxu0 0.0
  %608 = vmatpush.msra.mxu0 0.0
  %609 = vmatpush.msra.mxu0 0.0
  %610 = vmatpush.msra.mxu0 0.0
  %611 = vmatpush.msra.mxu0 0.0
  %612 = vmatpush.msra.mxu0 0.0
  %613 = vmatpush.msra.mxu0 0.0
  %614 = vmatpush.msra.mxu0 0.0
  %615 = vmatpush.msra.mxu0 0.0
  %616 = vmatpush.msra.mxu0 0.0
  %617 = vmatpush.msra.mxu0 0.0
  %618 = vmatpush.msra.mxu0 0.0
  %619 = vmatpush.msra.mxu0 %v20
  %620 = vmatpush.msra.mxu0 %v19
  %621 = vmatpush.msra.mxu0 %v18
  %622 = vmatpush.msra.mxu0 %v17
  %623 = vmatmul.f32.gmra.mxu0 %v605
  %v624 = vpop.f32.mrf.mxu0
  %v625 = vadd.f32 0.0, %v624
  %626 = vdwg.mxu0
  %v627 = vperm.slane %v21, 0
  %v628 = vadd.f32 %v627, %v625
  %v629 = vxor.u32 %v628, 2147483648
  %v630 = vmul.f32 %v629, 1.442695
  %v631 = vpow.pop %v630
  %v632 = vadd.f32 %v631, 1.0
  %v633 = vrcp.pop %v632
  %v634 = vmul.f32 %v632, %v633
  %v635 = vsub.f32 1.0, %v634
  %v636 = vmul.f32 %v633, %v635
  %v637 = vadd.f32 %v633, %v636
  %vm638 = vweird.f32 %v632
  %vm639 = vweird.f32 %v633
  %vm640 = vmor %vm638, %vm639
  %v641 = vsel %vm640, %v633, %v637
  %v642 = vand.u32 2147483647, %v632
  %vm643 = vcmp.eq.f32.partialorder %v642, 8.507059e+37
  %v644 = vand.u32 %v632, 2147483648
  %v645 = vor.u32 1.1754944e-38, %v644
  %v646 = vsel %vm643, %v645, %v641
  %v647 = vmul.f32 1.0, %v646
  %v648 = vtanh.pop %v628
  %649 = vrot.lane.b32.xlu0 %v647, 64
  %v650 = vpop.permute.xlu0 %649
  %v651 = vmul.f32 %v650, %v648
  %v653 = vrot.slane %v598, 6
  %v655 = vmul.f32 %v647, %v653
  %657 = vrot.lane.b32.xlu0 %v651, 32
  %v658 = vpop.permute.xlu0 %657
  %v660 = vadd.f32 %v655, %v658
  %v661 = vtanh.pop %v660
  %v662 = vmul.f32 %v650, %v661
  %vm663 = vcmask 254976
  %664 = vst.msk [vmem:[#allocation2] sm:$0x3] %vm663, %v662
  %v666 = vsel %vm64, %v662, 0
  %668 = vmatpush.msra.mxu0 0.0
  %669 = vmatpush.msra.mxu0 0.0
  %670 = vmatpush.msra.mxu0 0.0
  %671 = vmatpush.msra.mxu0 0.0
  %672 = vmatpush.msra.mxu0 0.0
  %673 = vmatpush.msra.mxu0 0.0
  %674 = vmatpush.msra.mxu0 0.0
  %675 = vmatpush.msra.mxu0 0.0
  %676 = vmatpush.msra.mxu0 0.0
  %677 = vmatpush.msra.mxu0 0.0
  %678 = vmatpush.msra.mxu0 0.0
  %679 = vmatpush.msra.mxu0 0.0
  %680 = vmatpush.msra.mxu0 %v20
  %681 = vmatpush.msra.mxu0 %v19
  %682 = vmatpush.msra.mxu0 %v18
  %683 = vmatpush.msra.mxu0 %v17
  %684 = vmatmul.f32.gmra.mxu0 %v666
  %v685 = vpop.f32.mrf.mxu0
  %v686 = vadd.f32 0.0, %v685
  %687 = vdwg.mxu0
  %v688 = vadd.f32 %v627, %v686
  %v689 = vxor.u32 %v688, 2147483648
  %v690 = vmul.f32 %v689, 1.442695
  %v691 = vpow.pop %v690
  %v692 = vadd.f32 %v691, 1.0
  %v693 = vrcp.pop %v692
  %v694 = vmul.f32 %v692, %v693
  %v695 = vsub.f32 1.0, %v694
  %v696 = vmul.f32 %v693, %v695
  %v697 = vadd.f32 %v693, %v696
  %vm698 = vweird.f32 %v692
  %vm699 = vweird.f32 %v693
  %vm700 = vmor %vm698, %vm699
  %v701 = vsel %vm700, %v693, %v697
  %v702 = vand.u32 2147483647, %v692
  %vm703 = vcmp.eq.f32.partialorder %v702, 8.507059e+37
  %v704 = vand.u32 %v692, 2147483648
  %v705 = vor.u32 1.1754944e-38, %v704
  %v706 = vsel %vm703, %v705, %v701
  %v707 = vmul.f32 1.0, %v706
  %v708 = vtanh.pop %v688
  %709 = vrot.lane.b32.xlu0 %v707, 64
  %v710 = vpop.permute.xlu0 %709
  %v711 = vmul.f32 %v710, %v708
  %v712 = vmul.f32 %v707, %v660
  %714 = vrot.lane.b32.xlu0 %v711, 32
  %v715 = vpop.permute.xlu0 %714
  %v717 = vadd.f32 %v712, %v715
  %v718 = vtanh.pop %v717
  %v719 = vmul.f32 %v710, %v718
  %720 = vst.msk [vmem:[#allocation2 + $0x2] sm:$0x3] %vm663, %v719
  %v722 = vsel %vm64, %v719, 0
  %724 = vmatpush.msra.mxu0 0.0
  %725 = vmatpush.msra.mxu0 0.0
  %726 = vmatpush.msra.mxu0 0.0
  %727 = vmatpush.msra.mxu0 0.0
  %728 = vmatpush.msra.mxu0 0.0
  %729 = vmatpush.msra.mxu0 0.0
  %730 = vmatpush.msra.mxu0 0.0
  %731 = vmatpush.msra.mxu0 0.0
  %732 = vmatpush.msra.mxu0 0.0
  %733 = vmatpush.msra.mxu0 0.0
  %734 = vmatpush.msra.mxu0 0.0
  %735 = vmatpush.msra.mxu0 0.0
  %736 = vmatpush.msra.mxu0 %v20
  %737 = vmatpush.msra.mxu0 %v19
  %738 = vmatpush.msra.mxu0 %v18
  %739 = vmatpush.msra.mxu0 %v17
  %740 = vmatmul.f32.gmra.mxu0 %v722
  %v741 = vpop.f32.mrf.mxu0
  %v742 = vadd.f32 0.0, %v741
  %743 = vdwg.mxu0
  %v744 = vadd.f32 %v627, %v742
  %v745 = vxor.u32 %v744, 2147483648
  %v746 = vmul.f32 %v745, 1.442695
  %v747 = vpow.pop %v746
  %v748 = vadd.f32 %v747, 1.0
  %v749 = vrcp.pop %v748
  %v750 = vmul.f32 %v748, %v749
  %v751 = vsub.f32 1.0, %v750
  %v752 = vmul.f32 %v749, %v751
  %v753 = vadd.f32 %v749, %v752
  %vm754 = vweird.f32 %v748
  %vm755 = vweird.f32 %v749
  %vm756 = vmor %vm754, %vm755
  %v757 = vsel %vm756, %v749, %v753
  %v758 = vand.u32 2147483647, %v748
  %vm759 = vcmp.eq.f32.partialorder %v758, 8.507059e+37
  %v760 = vand.u32 %v748, 2147483648
  %v761 = vor.u32 1.1754944e-38, %v760
  %v762 = vsel %vm759, %v761, %v757
  %v763 = vmul.f32 1.0, %v762
  %v764 = vtanh.pop %v744
  %765 = vrot.lane.b32.xlu0 %v763, 64
  %v766 = vpop.permute.xlu0 %765
  %v767 = vmul.f32 %v766, %v764
  %v768 = vmul.f32 %v763, %v717
  %770 = vrot.lane.b32.xlu0 %v767, 32
  %v771 = vpop.permute.xlu0 %770
  %v773 = vadd.f32 %v768, %v771
  %v774 = vtanh.pop %v773
  %v775 = vmul.f32 %v766, %v774
  %776 = vst.msk [vmem:[#allocation2 + $0x4] sm:$0x3] %vm663, %v775
  %v778 = vsel %vm64, %v775, 0
  %780 = vmatpush.msra.mxu0 0.0
  %781 = vmatpush.msra.mxu0 0.0
  %782 = vmatpush.msra.mxu0 0.0
  %783 = vmatpush.msra.mxu0 0.0
  %784 = vmatpush.msra.mxu0 0.0
  %785 = vmatpush.msra.mxu0 0.0
  %786 = vmatpush.msra.mxu0 0.0
  %787 = vmatpush.msra.mxu0 0.0
  %788 = vmatpush.msra.mxu0 0.0
  %789 = vmatpush.msra.mxu0 0.0
  %790 = vmatpush.msra.mxu0 0.0
  %791 = vmatpush.msra.mxu0 0.0
  %792 = vmatpush.msra.mxu0 %v20
  %793 = vmatpush.msra.mxu0 %v19
  %794 = vmatpush.msra.mxu0 %v18
  %795 = vmatpush.msra.mxu0 %v17
  %796 = vmatmul.f32.gmra.mxu0 %v778
  %v797 = vpop.f32.mrf.mxu0
  %v798 = vadd.f32 0.0, %v797
  %799 = vdwg.mxu0
  %v800 = vadd.f32 %v627, %v798
  %v801 = vxor.u32 %v800, 2147483648
  %v802 = vmul.f32 %v801, 1.442695
  %v803 = vpow.pop %v802
  %v804 = vadd.f32 %v803, 1.0
  %v805 = vrcp.pop %v804
  %v806 = vmul.f32 %v804, %v805
  %v807 = vsub.f32 1.0, %v806
  %v808 = vmul.f32 %v805, %v807
  %v809 = vadd.f32 %v805, %v808
  %vm810 = vweird.f32 %v804
  %vm811 = vweird.f32 %v805
  %vm812 = vmor %vm810, %vm811
  %v813 = vsel %vm812, %v805, %v809
  %v814 = vand.u32 2147483647, %v804
  %vm815 = vcmp.eq.f32.partialorder %v814, 8.507059e+37
  %v816 = vand.u32 %v804, 2147483648
  %v817 = vor.u32 1.1754944e-38, %v816
  %v818 = vsel %vm815, %v817, %v813
  %v819 = vmul.f32 1.0, %v818
  %v820 = vtanh.pop %v800
  %821 = vrot.lane.b32.xlu0 %v819, 64
  %v822 = vpop.permute.xlu0 %821
  %v823 = vmul.f32 %v822, %v820
  %v824 = vmul.f32 %v819, %v773
  %826 = vrot.lane.b32.xlu0 %v823, 32
  %v827 = vpop.permute.xlu0 %826
  %v829 = vadd.f32 %v824, %v827
  %v830 = vtanh.pop %v829
  %v831 = vmul.f32 %v822, %v830
  %832 = vst.msk [vmem:[#allocation2 + $0x6] sm:$0x3] %vm663, %v831
  %v834 = vsel %vm64, %v831, 0
  %836 = vmatpush.msra.mxu0 0.0
  %837 = vmatpush.msra.mxu0 0.0
  %838 = vmatpush.msra.mxu0 0.0
  %839 = vmatpush.msra.mxu0 0.0
  %840 = vmatpush.msra.mxu0 0.0
  %841 = vmatpush.msra.mxu0 0.0
  %842 = vmatpush.msra.mxu0 0.0
  %843 = vmatpush.msra.mxu0 0.0
  %844 = vmatpush.msra.mxu0 0.0
  %845 = vmatpush.msra.mxu0 0.0
  %846 = vmatpush.msra.mxu0 0.0
  %847 = vmatpush.msra.mxu0 0.0
  %848 = vmatpush.msra.mxu0 %v20
  %849 = vmatpush.msra.mxu0 %v19
  %850 = vmatpush.msra.mxu0 %v18
  %851 = vmatpush.msra.mxu0 %v17
  %852 = vmatmul.f32.gmra.mxu0 %v834
  %v853 = vpop.f32.mrf.mxu0
  %v854 = vadd.f32 0.0, %v853
  %855 = vdwg.mxu0
  %v856 = vadd.f32 %v627, %v854
  %v857 = vxor.u32 %v856, 2147483648
  %v858 = vmul.f32 %v857, 1.442695
  %v859 = vpow.pop %v858
  %v860 = vadd.f32 %v859, 1.0
  %v861 = vrcp.pop %v860
  %v862 = vmul.f32 %v860, %v861
  %v863 = vsub.f32 1.0, %v862
  %v864 = vmul.f32 %v861, %v863
  %v865 = vadd.f32 %v861, %v864
  %vm866 = vweird.f32 %v860
  %vm867 = vweird.f32 %v861
  %vm868 = vmor %vm866, %vm867
  %v869 = vsel %vm868, %v861, %v865
  %v870 = vand.u32 2147483647, %v860
  %vm871 = vcmp.eq.f32.partialorder %v870, 8.507059e+37
  %v872 = vand.u32 %v860, 2147483648
  %v873 = vor.u32 1.1754944e-38, %v872
  %v874 = vsel %vm871, %v873, %v869
  %v875 = vmul.f32 1.0, %v874
  %v876 = vtanh.pop %v856
  %877 = vrot.lane.b32.xlu0 %v875, 64
  %v878 = vpop.permute.xlu0 %877
  %v879 = vmul.f32 %v878, %v876
  %v880 = vmul.f32 %v875, %v829
  %882 = vrot.lane.b32.xlu0 %v879, 32
  %v883 = vpop.permute.xlu0 %882
  %v885 = vadd.f32 %v880, %v883
  %v886 = vtanh.pop %v885
  %v887 = vmul.f32 %v878, %v886
  %888 = vst.msk [vmem:[#allocation2 + $0x8] sm:$0x3] %vm663, %v887
  %v890 = vsel %vm64, %v887, 0
  %892 = vmatpush.msra.mxu0 0.0
  %893 = vmatpush.msra.mxu0 0.0
  %894 = vmatpush.msra.mxu0 0.0
  %895 = vmatpush.msra.mxu0 0.0
  %896 = vmatpush.msra.mxu0 0.0
  %897 = vmatpush.msra.mxu0 0.0
  %898 = vmatpush.msra.mxu0 0.0
  %899 = vmatpush.msra.mxu0 0.0
  %900 = vmatpush.msra.mxu0 0.0
  %901 = vmatpush.msra.mxu0 0.0
  %902 = vmatpush.msra.mxu0 0.0
  %903 = vmatpush.msra.mxu0 0.0
  %904 = vmatpush.msra.mxu0 %v20
  %905 = vmatpush.msra.mxu0 %v19
  %906 = vmatpush.msra.mxu0 %v18
  %907 = vmatpush.msra.mxu0 %v17
  %908 = vmatmul.f32.gmra.mxu0 %v890
  %v909 = vpop.f32.mrf.mxu0
  %v910 = vadd.f32 0.0, %v909
  %911 = vdwg.mxu0
  %v912 = vadd.f32 %v627, %v910
  %v913 = vxor.u32 %v912, 2147483648
  %v914 = vmul.f32 %v913, 1.442695
  %v915 = vpow.pop %v914
  %v916 = vadd.f32 %v915, 1.0
  %v917 = vrcp.pop %v916
  %v918 = vmul.f32 %v916, %v917
  %v919 = vsub.f32 1.0, %v918
  %v920 = vmul.f32 %v917, %v919
  %v921 = vadd.f32 %v917, %v920
  %vm922 = vweird.f32 %v916
  %vm923 = vweird.f32 %v917
  %vm924 = vmor %vm922, %vm923
  %v925 = vsel %vm924, %v917, %v921
  %v926 = vand.u32 2147483647, %v916
  %vm927 = vcmp.eq.f32.partialorder %v926, 8.507059e+37
  %v928 = vand.u32 %v916, 2147483648
  %v929 = vor.u32 1.1754944e-38, %v928
  %v930 = vsel %vm927, %v929, %v925
  %v931 = vmul.f32 1.0, %v930
  %v932 = vtanh.pop %v912
  %933 = vrot.lane.b32.xlu0 %v931, 64
  %v934 = vpop.permute.xlu0 %933
  %v935 = vmul.f32 %v934, %v932
  %v936 = vmul.f32 %v931, %v885
  %938 = vrot.lane.b32.xlu0 %v935, 32
  %v939 = vpop.permute.xlu0 %938
  %v941 = vadd.f32 %v936, %v939
  %v942 = vtanh.pop %v941
  %v943 = vmul.f32 %v934, %v942
  %944 = vst.msk [vmem:[#allocation2 + $0xa] sm:$0x3] %vm663, %v943
  %v946 = vsel %vm64, %v943, 0
  %948 = vmatpush.msra.mxu0 0.0
  %949 = vmatpush.msra.mxu0 0.0
  %950 = vmatpush.msra.mxu0 0.0
  %951 = vmatpush.msra.mxu0 0.0
  %952 = vmatpush.msra.mxu0 0.0
  %953 = vmatpush.msra.mxu0 0.0
  %954 = vmatpush.msra.mxu0 0.0
  %955 = vmatpush.msra.mxu0 0.0
  %956 = vmatpush.msra.mxu0 0.0
  %957 = vmatpush.msra.mxu0 0.0
  %958 = vmatpush.msra.mxu0 0.0
  %959 = vmatpush.msra.mxu0 0.0
  %960 = vmatpush.msra.mxu0 %v20
  %961 = vmatpush.msra.mxu0 %v19
  %962 = vmatpush.msra.mxu0 %v18
  %963 = vmatpush.msra.mxu0 %v17
  %964 = vmatmul.f32.gmra.mxu0 %v946
  %v965 = vpop.f32.mrf.mxu0
  %v966 = vadd.f32 0.0, %v965
  %967 = vdwg.mxu0
  %v968 = vadd.f32 %v627, %v966
  %v969 = vxor.u32 %v968, 2147483648
  %v970 = vmul.f32 %v969, 1.442695
  %v971 = vpow.pop %v970
  %v972 = vadd.f32 %v971, 1.0
  %v973 = vrcp.pop %v972
  %v974 = vmul.f32 %v972, %v973
  %v975 = vsub.f32 1.0, %v974
  %v976 = vmul.f32 %v973, %v975
  %v977 = vadd.f32 %v973, %v976
  %vm978 = vweird.f32 %v972
  %vm979 = vweird.f32 %v973
  %vm980 = vmor %vm978, %vm979
  %v981 = vsel %vm980, %v973, %v977
  %v982 = vand.u32 2147483647, %v972
  %vm983 = vcmp.eq.f32.partialorder %v982, 8.507059e+37
  %v984 = vand.u32 %v972, 2147483648
  %v985 = vor.u32 1.1754944e-38, %v984
  %v986 = vsel %vm983, %v985, %v981
  %v987 = vmul.f32 1.0, %v986
  %v988 = vtanh.pop %v968
  %989 = vrot.lane.b32.xlu0 %v987, 64
  %v990 = vpop.permute.xlu0 %989
  %v991 = vmul.f32 %v990, %v988
  %v992 = vmul.f32 %v987, %v941
  %994 = vrot.lane.b32.xlu0 %v991, 32
  %v995 = vpop.permute.xlu0 %994
  %v997 = vadd.f32 %v992, %v995
  %v998 = vtanh.pop %v997
  %v999 = vmul.f32 %v990, %v998
  %1000 = vst.msk [vmem:[#allocation2 + $0xc] sm:$0x3] %vm663, %v999
  %v1002 = vsel %vm64, %v999, 0
  %1004 = vmatpush.msra.mxu0 0.0
  %1005 = vmatpush.msra.mxu0 0.0
  %1006 = vmatpush.msra.mxu0 0.0
  %1007 = vmatpush.msra.mxu0 0.0
  %1008 = vmatpush.msra.mxu0 0.0
  %1009 = vmatpush.msra.mxu0 0.0
  %1010 = vmatpush.msra.mxu0 0.0
  %1011 = vmatpush.msra.mxu0 0.0
  %1012 = vmatpush.msra.mxu0 0.0
  %1013 = vmatpush.msra.mxu0 0.0
  %1014 = vmatpush.msra.mxu0 0.0
  %1015 = vmatpush.msra.mxu0 0.0
  %1016 = vmatpush.msra.mxu0 %v20
  %1017 = vmatpush.msra.mxu0 %v19
  %1018 = vmatpush.msra.mxu0 %v18
  %1019 = vmatpush.msra.mxu0 %v17
  %1020 = vmatmul.f32.gmra.mxu0 %v1002
  %v1021 = vpop.f32.mrf.mxu0
  %v1022 = vadd.f32 0.0, %v1021
  %1023 = vdwg.mxu0
  %v1024 = vadd.f32 %v627, %v1022
  %v1025 = vxor.u32 %v1024, 2147483648
  %v1026 = vmul.f32 %v1025, 1.442695
  %v1027 = vpow.pop %v1026
  %v1028 = vadd.f32 %v1027, 1.0
  %v1029 = vrcp.pop %v1028
  %v1030 = vmul.f32 %v1028, %v1029
  %v1031 = vsub.f32 1.0, %v1030
  %v1032 = vmul.f32 %v1029, %v1031
  %v1033 = vadd.f32 %v1029, %v1032
  %vm1034 = vweird.f32 %v1028
  %vm1035 = vweird.f32 %v1029
  %vm1036 = vmor %vm1034, %vm1035
  %v1037 = vsel %vm1036, %v1029, %v1033
  %v1038 = vand.u32 2147483647, %v1028
  %vm1039 = vcmp.eq.f32.partialorder %v1038, 8.507059e+37
  %v1040 = vand.u32 %v1028, 2147483648
  %v1041 = vor.u32 1.1754944e-38, %v1040
  %v1042 = vsel %vm1039, %v1041, %v1037
  %v1043 = vmul.f32 1.0, %v1042
  %v1044 = vtanh.pop %v1024
  %1045 = vrot.lane.b32.xlu0 %v1043, 64
  %v1046 = vpop.permute.xlu0 %1045
  %v1047 = vmul.f32 %v1046, %v1044
  %v1048 = vmul.f32 %v1043, %v997
  %1050 = vrot.lane.b32.xlu0 %v1047, 32
  %v1051 = vpop.permute.xlu0 %1050
  %v1053 = vadd.f32 %v1048, %v1051
  %v1054 = vtanh.pop %v1053
  %v1055 = vmul.f32 %v1046, %v1054
  %1056 = vst.msk [vmem:[#allocation2 + $0xe] sm:$0x3] %vm663, %v1055
  %v1057 = vld [vmem:[#allocation2] sm:$0xff]
  %v1058 = vld [vmem:[#allocation2 + $0x8] sm:$0xff]
  %v1059 = vperm.slane %v26, 0
  %v1061 = vsel %vm64, %v1057, 0
  %v1064 = vsel %vm64, %v1058, 0
  %1066 = vmatpush.msra.mxu0 0.0
  %1067 = vmatpush.msra.mxu0 0.0
  %1068 = vmatpush.msra.mxu0 0.0
  %1069 = vmatpush.msra.mxu0 0.0
  %1070 = vmatpush.msra.mxu0 0.0
  %1071 = vmatpush.msra.mxu0 0.0
  %1072 = vmatpush.msra.mxu0 0.0
  %1073 = vmatpush.msra.mxu0 0.0
  %1074 = vmatpush.msra.mxu0 0.0
  %1075 = vmatpush.msra.mxu0 0.0
  %1076 = vmatpush.msra.mxu0 0.0
  %1077 = vmatpush.msra.mxu0 0.0
  %1078 = vmatpush.msra.mxu0 %v25
  %1079 = vmatpush.msra.mxu0 %v24
  %1080 = vmatpush.msra.mxu0 %v23
  %1081 = vmatpush.msra.mxu0 %v22
  %1082 = vmatmul.f32.gmra.mxu0 %v1061
  %v1083 = vpop.f32.mrf.mxu0
  %v1084 = vadd.f32 %v1059, %v1083
  %1085 = vmatmul.f32.gmra.mxu0 %v1064
  %v1086 = vpop.f32.mrf.mxu0
  %v1087 = vadd.f32 %v1059, %v1086
  %1088 = vdwg.mxu0
  %vm1089 = vcmask 48128
  %1090 = vst.msk [vmem:[%s2] sm:$0xff] %vm1089, %v1084
  %1091 = vst.msk [vmem:[%s2 + $0x8] sm:$0xff] %vm1089, %v1087
  // Predicated region
  $region10: #{seq2seq1_forward.1} parent=0 // pred_check
    _
  $region11: #{seq2seq1_forward.1} parent=0 // pred_check_branch
    %1093 = sbr.rel (0) target = $region13
  $region12: #{seq2seq1_forward.1} parent=0 // pred_region
    _
  $region13: #{seq2seq1_forward.1} parent=0 // pred_fallthru
    _
  // Predicated region
  $region14: #{seq2seq1_forward.1} parent=0 // pred_check
    _
  $region15: #{seq2seq1_forward.1} parent=0 // pred_check_branch
    %1095 = sbr.rel (0) target = $region17
  $region16: #{seq2seq1_forward.1} parent=0 // pred_region
    _
  $region17: #{seq2seq1_forward.1} parent=0 // pred_fallthru
    _

</llo_original>
